<compile_context>
chip_gen: v7x
topology: tpu7x:2x2x1
jax: 0.10.0
libtpu: 0.0.40
codegen_flags: <defaults>
</compile_context>

<pallas_src>
import functools

import numpy as np
import jax
import jax.numpy as jnp
from jax import lax
from jax.experimental import pallas as pl
from jax.experimental.pallas import tpu as pltpu

_LANE = 128
_SUBLANE = 8
_UNROLL_MAX = 4      # static-unroll threshold for the residual-block chain
_MAX_TB = 1024       # max batch rows per grid step


def _round_up(x, m):
    return (x + m - 1) // m * m


def _pad_to(a, shape):
    return jnp.pad(a, [(0, t - s) for s, t in zip(a.shape, shape)])


# ----------------------------- Pallas kernel --------------------------------

def _contra_lr_kernel(x_ref, we_ref, bias_ref, w0_ref, w1_ref, o_ref, *,
                      n_blocks, dim_p, d_block_p):
    # All eval-mode BatchNorm affines were folded into the adjacent Linears at
    # parameter-prep time, so the kernel is a pure matmul/bias/ReLU chain.
    cdt = we_ref.dtype                                   # MXU input dtype (f32 / bf16)

    h = jnp.dot(x_ref[...].astype(cdt), we_ref[...],
                preferred_element_type=jnp.float32)
    h = h + bias_ref[0][:dim_p]                          # encoder bias

    def block(i, h, b0, b1):
        z = jnp.dot(h.astype(cdt), w0_ref[i],
                    preferred_element_type=jnp.float32) + b0
        z = jnp.maximum(z, 0.0)                          # ReLU (Dropout = id in eval)
        return jnp.dot(z.astype(cdt), w1_ref[i],
                       preferred_element_type=jnp.float32) + b1

    if n_blocks <= _UNROLL_MAX:
        for i in range(n_blocks):                        # static unroll (small depth)
            h = block(i, h,
                      bias_ref[1 + 2 * i][:d_block_p],
                      bias_ref[2 + 2 * i][:dim_p])
    else:
        # Scaling guard: bound live ranges / code size for deep stacks.
        def body(i, h):
            return block(i, h,
                         bias_ref[1 + 2 * i][:d_block_p],
                         bias_ref[2 + 2 * i][:dim_p])
        h = lax.fori_loop(0, n_blocks, body, h)

    o_ref[...] = h.astype(o_ref.dtype)                   # final BN folded into last W1/b1


def contra_lr_forward(x, kp, *, n_blocks, d_out_features, tb=None,
                      out_dtype=jnp.float32):
    """x: (B, d_in) float32.  Returns (B, d_out_features) `out_dtype`."""
    B, d_in = x.shape
    dim_p = kp["we"].shape[1]
    d_block_p = kp["w0"].shape[2]

    # One big batch tile: this problem is overhead-bound at small B, so avoid
    # extra grid steps.  Only split above _MAX_TB rows per step.
    if tb is None:
        tb = min(_round_up(B, _SUBLANE), _MAX_TB)
    else:
        tb = min(_round_up(tb, _SUBLANE), _round_up(B, _SUBLANE))
    grid = (pl.cdiv(B, tb),)
    # No host-side padding of x: partial last block is fine (rows independent,
    # out-of-bounds output rows are dropped by Pallas).

    def const_spec(a):
        nd = a.ndim
        # Constant operands (index_map never changes) -> single buffer.
        return pl.BlockSpec(a.shape, lambda i, _nd=nd: (0,) * _nd,
                            pipeline_mode=pl.Buffered(1))

    in_specs = [
        pl.BlockSpec((tb, d_in), lambda i: (i, 0)),      # x, tiled over batch
        const_spec(kp["we"]),
        const_spec(kp["bias"]),
        const_spec(kp["w0"]),
        const_spec(kp["w1"]),
    ]
    out_spec = pl.BlockSpec((tb, dim_p), lambda i: (i, 0))   # lane-dense store

    def nbytes(a):
        return int(a.size) * int(a.dtype.itemsize)

    out_isz = int(np.dtype(out_dtype).itemsize)
    weight_bytes = sum(nbytes(kp[k]) for k in ("we", "bias", "w0", "w1"))
    flops = 2 * B * (d_in * dim_p
                     + n_blocks * (dim_p * d_block_p + d_block_p * dim_p))
    bytes_accessed = nbytes(x) + weight_bytes + B * dim_p * out_isz

    # VMEM budget: double-buffered x/out tiles + single-buffered resident
    # weights + live f32 intermediates, with headroom; clamp under 3/4 of the
    # physical VMEM of this generation (v7x only has 64 MiB).
    tile_bytes = 2 * (tb * d_in * int(x.dtype.itemsize) + tb * dim_p * out_isz)
    act_bytes = tb * (dim_p + d_block_p) * 4
    vmem_needed = tile_bytes + weight_bytes + act_bytes
    try:
        phys_vmem = int(pltpu.get_tpu_info().vmem_capacity_bytes)
    except Exception:
        phys_vmem = 64 * 1024 * 1024                      # conservative (v7x)
    vmem_cap = (phys_vmem * 3) // 4
    vmem_limit = min(max(2 * vmem_needed, 16 * 1024 * 1024), vmem_cap)

    kernel = functools.partial(_contra_lr_kernel, n_blocks=n_blocks,
                               dim_p=dim_p, d_block_p=d_block_p)

    out = pl.pallas_call(
        kernel,
        out_shape=jax.ShapeDtypeStruct((B, dim_p), out_dtype),
        grid_spec=pltpu.PrefetchScalarGridSpec(
            num_scalar_prefetch=0,
            grid=grid,
            in_specs=in_specs,
            out_specs=out_spec,
        ),
        compiler_params=pltpu.CompilerParams(
            dimension_semantics=("parallel",),
            vmem_limit_bytes=int(vmem_limit)),
        cost_estimate=pl.CostEstimate(
            flops=int(flops), transcendentals=0,
            bytes_accessed=int(bytes_accessed)),
    )(x, kp["we"], kp["bias"], kp["w0"], kp["w1"])

    return out[:, :d_out_features]


# --------------------------- parameter construction -------------------------

def make_raw_params(key, *, d_in, dim, d_block, n_blocks):
    """Parameters + BN running stats mirroring the PyTorch module (eval mode).
    Linear weights stored transposed: (in_features, out_features)."""
    f32 = jnp.float32
    ks = jax.random.split(key, 4)

    def bn_stats(k, n):
        k1, k2, k3, k4 = jax.random.split(k, 4)
        return dict(
            gamma=1.0 + 0.1 * jax.random.normal(k1, (n,), f32),
            beta=0.1 * jax.random.normal(k2, (n,), f32),
            mean=0.1 * jax.random.normal(k3, (n,), f32),
            var=1.0 + 0.1 * jax.random.uniform(k4, (n,), f32),
        )

    raw = dict(
        we=0.1 * jax.random.normal(ks[0], (d_in, dim), f32),
        be=0.1 * jax.random.normal(ks[1], (dim,), f32),
        blocks=[],
        fbn=bn_stats(ks[3], dim),
    )
    for i in range(n_blocks):
        kb = jax.random.fold_in(ks[2], i)
        k1, k2, k3, k4, k5 = jax.random.split(kb, 5)
        raw["blocks"].append(dict(
            bn=bn_stats(k1, dim),
            w0=0.1 * jax.random.normal(k2, (dim, d_block), f32),
            b0=0.1 * jax.random.normal(k3, (d_block,), f32),
            w1=0.1 * jax.random.normal(k4, (d_block, dim), f32),
            b1=0.1 * jax.random.normal(k5, (dim,), f32),
        ))
    return raw


def prepare_kernel_params(raw, *, eps=1e-5, lane=_LANE,
                          weight_dtype=jnp.float32):
    """Fold eval-mode BatchNorm affines into the adjacent Linears, zero-pad
    feature dims to multiples of 128 (lane-dense MXU / stores), pack all biases
    into one array, and cast the big weights to `weight_dtype`."""
    n_blocks = len(raw["blocks"])
    assert n_blocks >= 1, "n_blocks == 0 path is just the encoder Linear"
    d_in, dim = raw["we"].shape
    d_block = raw["blocks"][0]["w0"].shape[1]
    dim_p = _round_up(dim, lane)
    d_block_p = _round_up(d_block, lane)
    maxw = max(dim_p, d_block_p)

    def affine(bn):
        scale = bn["gamma"] / jnp.sqrt(bn["var"] + eps)
        shift = bn["beta"] - bn["mean"] * scale
        return scale, shift

    w0s, w1s = [], []
    bias_rows = [_pad_to(raw["be"], (maxw,))]            # row 0: encoder bias
    for i, blk in enumerate(raw["blocks"]):
        s, t = affine(blk["bn"])
        w0 = s[:, None] * blk["w0"]                      # fold pre-Linear BN
        b0 = t @ blk["w0"] + blk["b0"]
        w1, b1 = blk["w1"], blk["b1"]
        if i == n_blocks - 1:                            # fold final BN into last Linear1
            fs, ft = affine(raw["fbn"])
            w1 = w1 * fs[None, :]
            b1 = b1 * fs + ft
        w0s.append(_pad_to(w0, (dim_p, d_block_p)))
        w1s.append(_pad_to(w1, (d_block_p, dim_p)))
        bias_rows.append(_pad_to(b0, (maxw,)))           # row 1 + 2i
        bias_rows.append(_pad_to(b1, (maxw,)))           # row 2 + 2i

    return dict(
        we=_pad_to(raw["we"], (d_in, dim_p)).astype(weight_dtype),
        w0=jnp.stack(w0s).astype(weight_dtype),          # (n_blocks, dim_p, d_block_p)
        w1=jnp.stack(w1s).astype(weight_dtype),          # (n_blocks, d_block_p, dim_p)
        bias=jnp.stack(bias_rows),                       # (1 + 2*n_blocks, maxw) f32
    )


def reference_forward(x, raw, *, eps=1e-5):
    """Pure-JAX (f32) reference mirroring the PyTorch forward in eval mode."""
    h = x @ raw["we"] + raw["be"]
    for blk in raw["blocks"]:
        bn = blk["bn"]
        z = (h - bn["mean"]) / jnp.sqrt(bn["var"] + eps) * bn["gamma"] + bn["beta"]
        z = jnp.maximum(z @ blk["w0"] + blk["b0"], 0.0)
        h = z @ blk["w1"] + blk["b1"]
    fbn = raw["fbn"]
    return (h - fbn["mean"]) / jnp.sqrt(fbn["var"] + eps) * fbn["gamma"] + fbn["beta"]


# ----------------------------------- main ------------------------------------

if __name__ == "__main__":
    # Shapes consistent with: contra_lr(d_in=32, d_num=0, d_out=2, dim=32,
    # dropout=0.1, d_block=64, n_blocks=2, num_embeddings=None), eval forward.
    B, D_IN, DIM, D_BLOCK, N_BLOCKS = 256, 32, 32, 64, 2

    key = jax.random.PRNGKey(0)
    k_x, k_p = jax.random.split(key)
    x = jax.random.normal(k_x, (B, D_IN), jnp.float32)

    raw = make_raw_params(k_p, d_in=D_IN, dim=DIM, d_block=D_BLOCK,
                          n_blocks=N_BLOCKS)
    ref = reference_forward(x, raw)

    # 1) f32 weights: exact-path check against the pure-JAX reference.
    kp32 = prepare_kernel_params(raw, weight_dtype=jnp.float32)
    out32 = jax.block_until_ready(
        contra_lr_forward(x, kp32, n_blocks=N_BLOCKS, d_out_features=DIM))
    assert out32.shape == (B, DIM)
    assert jnp.allclose(out32, ref, rtol=1e-4, atol=1e-5), "f32 mismatch"

    # 2) bf16 weights + bf16 MXU inputs (f32 accumulation): halves weight DMA,
    #    doubles MXU throughput on v6e/v7x; only quantization error remains.
    kp16 = prepare_kernel_params(raw, weight_dtype=jnp.bfloat16)
    out16 = jax.block_until_ready(
        contra_lr_forward(x, kp16, n_blocks=N_BLOCKS, d_out_features=DIM))
    assert out16.shape == (B, DIM)
    assert jnp.allclose(out16, ref, rtol=5e-2, atol=5e-2), "bf16 mismatch"

    print("KERNEL_OK")
</pallas_src>

<mosaic_0001>
module attributes {stable_mosaic.version = 11 : i64} {
  func.func @_contra_lr_kernel(%arg0: i32, %arg1: memref<256x32xf32, #tpu.memory_space<vmem>>, %arg2: memref<32x128xf32, #tpu.memory_space<vmem>>, %arg3: memref<5x128xf32, #tpu.memory_space<vmem>>, %arg4: memref<2x128x128xf32, #tpu.memory_space<vmem>>, %arg5: memref<2x128x128xf32, #tpu.memory_space<vmem>>, %arg6: memref<256x128xf32, #tpu.memory_space<vmem>>) attributes {dimension_semantics = [#tpu.dimension_semantics<parallel>], iteration_bounds = array<i64: 1>, scalar_prefetch = 0 : i64, scratch_operands = 0 : i64, tpu.core_type = #tpu.core_type<tc>, window_params = [{transform_indices = @transform_0, window_bounds = array<i64: 256, 32>}, {pipeline_mode = #tpu.pipeline_mode<synchronous>, transform_indices = @transform_1, window_bounds = array<i64: 32, 128>}, {pipeline_mode = #tpu.pipeline_mode<synchronous>, transform_indices = @transform_2, window_bounds = array<i64: 5, 128>}, {pipeline_mode = #tpu.pipeline_mode<synchronous>, transform_indices = @transform_3, window_bounds = array<i64: 2, 128, 128>}, {pipeline_mode = #tpu.pipeline_mode<synchronous>, transform_indices = @transform_4, window_bounds = array<i64: 2, 128, 128>}, {transform_indices = @transform_5, window_bounds = array<i64: 256, 128>}]} {
    %c0 = arith.constant 0 : index
    %c0_0 = arith.constant 0 : index
    %0 = vector.load %arg1[%c0, %c0_0] : memref<256x32xf32, #tpu.memory_space<vmem>>, vector<256x32xf32>
    %c0_1 = arith.constant 0 : index
    %c0_2 = arith.constant 0 : index
    %1 = vector.load %arg2[%c0_1, %c0_2] : memref<32x128xf32, #tpu.memory_space<vmem>>, vector<32x128xf32>
    %cst = arith.constant dense<0.000000e+00> : vector<256x128xf32>
    %2 = tpu.matmul %0, %1, %cst {dimension_numbers = #tpu.dot_dimension_numbers<[1], [0], [0], [1], [0, 0, 1, 1], [], []>} : vector<256x32xf32>, vector<32x128xf32>, vector<256x128xf32> -> vector<256x128xf32>
    %c0_3 = arith.constant 0 : index
    %c0_4 = arith.constant 0 : index
    %3 = vector.load %arg3[%c0_3, %c0_4] : memref<5x128xf32, #tpu.memory_space<vmem>>, vector<1x128xf32>
    %4 = vector.shape_cast %3 : vector<1x128xf32> to vector<128xf32>
    %5 = vector.shape_cast %4 : vector<128xf32> to vector<1x128xf32>
    %6 = vector.broadcast %5 : vector<1x128xf32> to vector<256x128xf32>
    %7 = arith.addf %2, %6 : vector<256x128xf32>
    %c1 = arith.constant 1 : index
    %c0_5 = arith.constant 0 : index
    %8 = vector.load %arg3[%c1, %c0_5] : memref<5x128xf32, #tpu.memory_space<vmem>>, vector<1x128xf32>
    %9 = vector.shape_cast %8 : vector<1x128xf32> to vector<128xf32>
    %c2 = arith.constant 2 : index
    %c0_6 = arith.constant 0 : index
    %10 = vector.load %arg3[%c2, %c0_6] : memref<5x128xf32, #tpu.memory_space<vmem>>, vector<1x128xf32>
    %11 = vector.shape_cast %10 : vector<1x128xf32> to vector<128xf32>
    %c0_7 = arith.constant 0 : index
    %c0_8 = arith.constant 0 : index
    %c0_9 = arith.constant 0 : index
    %12 = vector.load %arg4[%c0_7, %c0_8, %c0_9] : memref<2x128x128xf32, #tpu.memory_space<vmem>>, vector<1x128x128xf32>
    %13 = vector.shape_cast %12 : vector<1x128x128xf32> to vector<128x128xf32>
    %cst_10 = arith.constant dense<0.000000e+00> : vector<256x128xf32>
    %14 = tpu.matmul %7, %13, %cst_10 {dimension_numbers = #tpu.dot_dimension_numbers<[1], [0], [0], [1], [0, 0, 1, 1], [], []>} : vector<256x128xf32>, vector<128x128xf32>, vector<256x128xf32> -> vector<256x128xf32>
    %15 = vector.shape_cast %9 : vector<128xf32> to vector<1x128xf32>
    %16 = vector.broadcast %15 : vector<1x128xf32> to vector<256x128xf32>
    %17 = arith.addf %14, %16 : vector<256x128xf32>
    %cst_11 = arith.constant 0.000000e+00 : f32
    %18 = vector.broadcast %cst_11 : f32 to vector<256x128xf32>
    %19 = arith.maximumf %17, %18 : vector<256x128xf32>
    %c0_12 = arith.constant 0 : index
    %c0_13 = arith.constant 0 : index
    %c0_14 = arith.constant 0 : index
    %20 = vector.load %arg5[%c0_12, %c0_13, %c0_14] : memref<2x128x128xf32, #tpu.memory_space<vmem>>, vector<1x128x128xf32>
    %21 = vector.shape_cast %20 : vector<1x128x128xf32> to vector<128x128xf32>
    %cst_15 = arith.constant dense<0.000000e+00> : vector<256x128xf32>
    %22 = tpu.matmul %19, %21, %cst_15 {dimension_numbers = #tpu.dot_dimension_numbers<[1], [0], [0], [1], [0, 0, 1, 1], [], []>} : vector<256x128xf32>, vector<128x128xf32>, vector<256x128xf32> -> vector<256x128xf32>
    %23 = vector.shape_cast %11 : vector<128xf32> to vector<1x128xf32>
    %24 = vector.broadcast %23 : vector<1x128xf32> to vector<256x128xf32>
    %25 = arith.addf %22, %24 : vector<256x128xf32>
    %c3 = arith.constant 3 : index
    %c0_16 = arith.constant 0 : index
    %26 = vector.load %arg3[%c3, %c0_16] : memref<5x128xf32, #tpu.memory_space<vmem>>, vector<1x128xf32>
    %27 = vector.shape_cast %26 : vector<1x128xf32> to vector<128xf32>
    %c4 = arith.constant 4 : index
    %c0_17 = arith.constant 0 : index
    %28 = vector.load %arg3[%c4, %c0_17] : memref<5x128xf32, #tpu.memory_space<vmem>>, vector<1x128xf32>
    %29 = vector.shape_cast %28 : vector<1x128xf32> to vector<128xf32>
    %c1_18 = arith.constant 1 : index
    %c0_19 = arith.constant 0 : index
    %c0_20 = arith.constant 0 : index
    %30 = vector.load %arg4[%c1_18, %c0_19, %c0_20] : memref<2x128x128xf32, #tpu.memory_space<vmem>>, vector<1x128x128xf32>
    %31 = vector.shape_cast %30 : vector<1x128x128xf32> to vector<128x128xf32>
    %cst_21 = arith.constant dense<0.000000e+00> : vector<256x128xf32>
    %32 = tpu.matmul %25, %31, %cst_21 {dimension_numbers = #tpu.dot_dimension_numbers<[1], [0], [0], [1], [0, 0, 1, 1], [], []>} : vector<256x128xf32>, vector<128x128xf32>, vector<256x128xf32> -> vector<256x128xf32>
    %33 = vector.shape_cast %27 : vector<128xf32> to vector<1x128xf32>
    %34 = vector.broadcast %33 : vector<1x128xf32> to vector<256x128xf32>
    %35 = arith.addf %32, %34 : vector<256x128xf32>
    %cst_22 = arith.constant 0.000000e+00 : f32
    %36 = vector.broadcast %cst_22 : f32 to vector<256x128xf32>
    %37 = arith.maximumf %35, %36 : vector<256x128xf32>
    %c1_23 = arith.constant 1 : index
    %c0_24 = arith.constant 0 : index
    %c0_25 = arith.constant 0 : index
    %38 = vector.load %arg5[%c1_23, %c0_24, %c0_25] : memref<2x128x128xf32, #tpu.memory_space<vmem>>, vector<1x128x128xf32>
    %39 = vector.shape_cast %38 : vector<1x128x128xf32> to vector<128x128xf32>
    %cst_26 = arith.constant dense<0.000000e+00> : vector<256x128xf32>
    %40 = tpu.matmul %37, %39, %cst_26 {dimension_numbers = #tpu.dot_dimension_numbers<[1], [0], [0], [1], [0, 0, 1, 1], [], []>} : vector<256x128xf32>, vector<128x128xf32>, vector<256x128xf32> -> vector<256x128xf32>
    %41 = vector.shape_cast %29 : vector<128xf32> to vector<1x128xf32>
    %42 = vector.broadcast %41 : vector<1x128xf32> to vector<256x128xf32>
    %43 = arith.addf %40, %42 : vector<256x128xf32>
    %c0_27 = arith.constant 0 : index
    %c0_28 = arith.constant 0 : index
    %44 = vector.load %arg6[%c0_27, %c0_28] : memref<256x128xf32, #tpu.memory_space<vmem>>, vector<256x128xf32>
    tpu.vector_store %arg6[%c0_27, %c0_28], %43 {strides = array<i32>} : memref<256x128xf32, #tpu.memory_space<vmem>>, vector<256x128xf32>,
    return
  }
  func.func @transform_0(%arg0: i32) -> (i32, i32) {
    %c0_i32 = arith.constant 0 : i32
    %c0_i32_0 = arith.constant 0 : i32
    return %arg0, %c0_i32 : i32, i32
  }
  func.func @transform_1(%arg0: i32) -> (i32, i32) {
    %c0_i32 = arith.constant 0 : i32
    %c0_i32_0 = arith.constant 0 : i32
    %c0_i32_1 = arith.constant 0 : i32
    return %c0_i32, %c0_i32_0 : i32, i32
  }
  func.func @transform_2(%arg0: i32) -> (i32, i32) {
    %c0_i32 = arith.constant 0 : i32
    %c0_i32_0 = arith.constant 0 : i32
    %c0_i32_1 = arith.constant 0 : i32
    return %c0_i32, %c0_i32_0 : i32, i32
  }
  func.func @transform_3(%arg0: i32) -> (i32, i32, i32) {
    %c0_i32 = arith.constant 0 : i32
    %c0_i32_0 = arith.constant 0 : i32
    %c0_i32_1 = arith.constant 0 : i32
    %c0_i32_2 = arith.constant 0 : i32
    return %c0_i32, %c0_i32_0, %c0_i32_1 : i32, i32, i32
  }
  func.func @transform_4(%arg0: i32) -> (i32, i32, i32) {
    %c0_i32 = arith.constant 0 : i32
    %c0_i32_0 = arith.constant 0 : i32
    %c0_i32_1 = arith.constant 0 : i32
    %c0_i32_2 = arith.constant 0 : i32
    return %c0_i32, %c0_i32_0, %c0_i32_1 : i32, i32, i32
  }
  func.func @transform_5(%arg0: i32) -> (i32, i32) {
    %c0_i32 = arith.constant 0 : i32
    %c0_i32_0 = arith.constant 0 : i32
    return %arg0, %c0_i32 : i32, i32
  }
}

</mosaic_0001>

<llo_original>
// kernel: tpu_custom_call.1
$region0: #{tpu_custom_call.1}
  #allocation0 [shape = 'u32[]', space=smem, size = 0x4, offset = 0x4, fixed_abs, tag = 'smem constant byte address 0x4 - core index']
  #allocation1 [shape = 'u32[144,128]{1,0:T(1,128)}', space=vmem, size = 0x12000, scoped, tag = 'internal scratch']
  %s0 = inlined_call_operand.vmem [shape: f32[256,32], index: 0, kind: input, shape index: {}]
  %s1 = inlined_call_operand.vmem [shape: f32[32,128], index: 1, kind: input, shape index: {}]
  %s2 = inlined_call_operand.vmem [shape: f32[5,128], index: 2, kind: input, shape index: {}]
  %s3 = inlined_call_operand.vmem [shape: f32[2,128,128], index: 3, kind: input, shape index: {}]
  %s4 = inlined_call_operand.hbm [shape: f32[2,128,128], index: 4, kind: input, shape index: {}]
  %s5 = inlined_call_operand.hbm [shape: f32[256,128], index: 5, kind: output, shape index: {}]
  %s6 = sld [smem:[#allocation0]]
  $region34: #{tpu_custom_call.1} parent=0
    _
  %s8 = ssub.s32 1, %s6
  %s9 = scalar_select 0, %s8, %s6
  $region1: #{tpu_custom_call.1} parent=0
    #allocation2 [shape = 'u8[131072]{0}', space=vmem, size = 0x20000, scoped, tag = 'input window, operand 4, single buffered']
    #allocation3 [shape = 's32[1]{0}', space=sflag, size = 0x4, scoped, tag = 'scoped memory for tpu_custom_call.1']
    #allocation4 [shape = 's32[1]{0}', space=sflag, size = 0x4, scoped, tag = 'scoped memory for tpu_custom_call.1']
    #allocation5 [shape = 'u8[131072]{0}', space=vmem, size = 0x20000, scoped, tag = 'output window, operand 0, single buffered']
    %10 = vsyncpa [#allocation3], 0
    %11 = vsyncpa [#allocation4], 0
    // Predicated region
    $region2: #{tpu_custom_call.1} parent=1 // pred_check
      _
    $region3: #{tpu_custom_call.1} parent=1 // pred_check_branch
      %13 = sbr.rel (0) target = $region5
    $region4: #{tpu_custom_call.1} parent=1 // pred_region
      _
    $region5: #{tpu_custom_call.1} parent=1 // pred_fallthru
      _
    // Predicated region
    $region6: #{tpu_custom_call.1} parent=1 // pred_check
      _
    $region7: #{tpu_custom_call.1} parent=1 // pred_check_branch
      %15 = sbr.rel (0) target = $region9
    $region8: #{tpu_custom_call.1} parent=1 // pred_region
      _
    $region9: #{tpu_custom_call.1} parent=1 // pred_fallthru
      _
    // Predicated region
    $region10: #{tpu_custom_call.1} parent=1 // pred_check
      _
    $region11: #{tpu_custom_call.1} parent=1 // pred_check_branch
      %17 = sbr.rel (0) target = $region13
    $region12: #{tpu_custom_call.1} parent=1 // pred_region
      _
    $region13: #{tpu_custom_call.1} parent=1 // pred_fallthru
      _
    // Predicated region
    $region14: #{tpu_custom_call.1} parent=1 // pred_check
      _
    $region15: #{tpu_custom_call.1} parent=1 // pred_check_branch
      %19 = sbr.rel (0) target = $region17
    $region16: #{tpu_custom_call.1} parent=1 // pred_region
      _
    $region17: #{tpu_custom_call.1} parent=1 // pred_fallthru
      _
    // Predicated region
    $region18: #{tpu_custom_call.1} parent=1 // pred_check
      _
    $region19: #{tpu_custom_call.1} parent=1 // pred_check_branch
      %21 = sbr.rel (0) target = $region21
    $region20: #{tpu_custom_call.1} parent=1 // pred_region
      %s23 = ssub.s32 4096, 4096
      %24 = vsyncadd [#allocation3], %s23
      %s25 = sshll.u32 [#allocation2], 4
      %s26 = int_to_ptr.vmem [resolvable:$true] %s25
      %31 = dma.hbm_to_vmem [thread:$0]  %s4, 4096, %s26, [#allocation3], 128, 128, 8
    $region21: #{tpu_custom_call.1} parent=1 // pred_fallthru
      _
    // Predicated region
    $region22: #{tpu_custom_call.1} parent=1 // pred_check
      _
    $region23: #{tpu_custom_call.1} parent=1 // pred_check_branch
      %33 = sbr.rel (0) target = $region25
    $region24: #{tpu_custom_call.1} parent=1 // pred_region
      %34 = dma.done [#allocation3], 4096
    $region25: #{tpu_custom_call.1} parent=1 // pred_fallthru
      _
    %v35 = vld [vmem:[%s0] sm:$0xff]
    %v36 = vld [vmem:[%s0 + $0x8] sm:$0xff]
    %v37 = vld [vmem:[%s0 + $0x10] sm:$0xff]
    %v38 = vld [vmem:[%s0 + $0x18] sm:$0xff]
    %v39 = vld [vmem:[%s0 + $0x20] sm:$0xff]
    %v40 = vld [vmem:[%s0 + $0x28] sm:$0xff]
    %v41 = vld [vmem:[%s0 + $0x30] sm:$0xff]
    %v42 = vld [vmem:[%s0 + $0x38] sm:$0xff]
    %v43 = vld [vmem:[%s0 + $0x40] sm:$0xff]
    %v44 = vld [vmem:[%s0 + $0x48] sm:$0xff]
    %v45 = vld [vmem:[%s0 + $0x50] sm:$0xff]
    %v46 = vld [vmem:[%s0 + $0x58] sm:$0xff]
    %v47 = vld [vmem:[%s0 + $0x60] sm:$0xff]
    %v48 = vld [vmem:[%s0 + $0x68] sm:$0xff]
    %v49 = vld [vmem:[%s0 + $0x70] sm:$0xff]
    %v50 = vld [vmem:[%s0 + $0x78] sm:$0xff]
    %v51 = vld [vmem:[%s0 + $0x80] sm:$0xff]
    %v52 = vld [vmem:[%s0 + $0x88] sm:$0xff]
    %v53 = vld [vmem:[%s0 + $0x90] sm:$0xff]
    %v54 = vld [vmem:[%s0 + $0x98] sm:$0xff]
    %v55 = vld [vmem:[%s0 + $0xa0] sm:$0xff]
    %v56 = vld [vmem:[%s0 + $0xa8] sm:$0xff]
    %v57 = vld [vmem:[%s0 + $0xb0] sm:$0xff]
    %v58 = vld [vmem:[%s0 + $0xb8] sm:$0xff]
    %v59 = vld [vmem:[%s0 + $0xc0] sm:$0xff]
    %v60 = vld [vmem:[%s0 + $0xc8] sm:$0xff]
    %v61 = vld [vmem:[%s0 + $0xd0] sm:$0xff]
    %v62 = vld [vmem:[%s0 + $0xd8] sm:$0xff]
    %v63 = vld [vmem:[%s0 + $0xe0] sm:$0xff]
    %v64 = vld [vmem:[%s0 + $0xe8] sm:$0xff]
    %v65 = vld [vmem:[%s0 + $0xf0] sm:$0xff]
    %v66 = vld [vmem:[%s0 + $0xf8] sm:$0xff]
    %v67 = vld [vmem:[%s1] sm:$0xff]
    %v68 = vld [vmem:[%s1 + $0x8] sm:$0xff]
    %v69 = vld [vmem:[%s1 + $0x10] sm:$0xff]
    %v70 = vld [vmem:[%s1 + $0x18] sm:$0xff]
    %v71 = vld [vmem:[%s2] sm:$0x1]
    %v72 = vlaneseq
    %v73 = vshrl.u32 %v72, 7
    %v74 = vsub.s32 0, %v73
    %v75 = vrot.slane %v71, %v74
    %vm76 = vcmask 261120
    %v78 = vsel %vm76, %v35, 0
    %v81 = vsel %vm76, %v36, 0
    %v84 = vsel %vm76, %v37, 0
    %v87 = vsel %vm76, %v38, 0
    %v90 = vsel %vm76, %v39, 0
    %v93 = vsel %vm76, %v40, 0
    %v96 = vsel %vm76, %v41, 0
    %v99 = vsel %vm76, %v42, 0
    %v102 = vsel %vm76, %v43, 0
    %v105 = vsel %vm76, %v44, 0
    %v108 = vsel %vm76, %v45, 0
    %v111 = vsel %vm76, %v46, 0
    %v114 = vsel %vm76, %v47, 0
    %v117 = vsel %vm76, %v48, 0
    %v120 = vsel %vm76, %v49, 0
    %v123 = vsel %vm76, %v50, 0
    %v126 = vsel %vm76, %v51, 0
    %v129 = vsel %vm76, %v52, 0
    %v132 = vsel %vm76, %v53, 0
    %v135 = vsel %vm76, %v54, 0
    %v138 = vsel %vm76, %v55, 0
    %v141 = vsel %vm76, %v56, 0
    %v144 = vsel %vm76, %v57, 0
    %v147 = vsel %vm76, %v58, 0
    %v150 = vsel %vm76, %v59, 0
    %v153 = vsel %vm76, %v60, 0
    %v156 = vsel %vm76, %v61, 0
    %v159 = vsel %vm76, %v62, 0
    %v162 = vsel %vm76, %v63, 0
    %v165 = vsel %vm76, %v64, 0
    %v168 = vsel %vm76, %v65, 0
    %v171 = vsel %vm76, %v66, 0
    %173 = vmatprep.subr.mxu0 0.0
    %174 = vmatpush1.msra.mxu0 %v67
    %175 = vmatprep.subr.mxu0 0.0
    %176 = vmatpush1.msra.mxu0 %v68
    %177 = vmatprep.subr.mxu0 0.0
    %178 = vmatpush1.msra.mxu0 %v69
    %179 = vmatprep.subr.mxu0 0.0
    %180 = vmatpush1.msra.mxu0 %v70
    %181 = vmatprep.subr.mxu0 0.0
    %182 = vmatpush1.msra.mxu0 0.0
    %183 = vmatprep.subr.mxu0 0.0
    %184 = vmatpush1.msra.mxu0 0.0
    %185 = vmatprep.subr.mxu0 0.0
    %186 = vmatpush1.msra.mxu0 0.0
    %187 = vmatprep.subr.mxu0 0.0
    %188 = vmatpush1.msra.mxu0 0.0
    %189 = vmatprep.subr.mxu0 0.0
    %190 = vmatpush1.msra.mxu0 0.0
    %191 = vmatprep.subr.mxu0 0.0
    %192 = vmatpush1.msra.mxu0 0.0
    %193 = vmatprep.subr.mxu0 0.0
    %194 = vmatpush1.msra.mxu0 0.0
    %195 = vmatprep.subr.mxu0 0.0
    %196 = vmatpush1.msra.mxu0 0.0
    %197 = vmatprep.subr.mxu0 0.0
    %198 = vmatpush1.msra.mxu0 0.0
    %199 = vmatprep.subr.mxu0 0.0
    %200 = vmatpush1.msra.mxu0 0.0
    %201 = vmatprep.subr.mxu0 0.0
    %202 = vmatpush1.msra.mxu0 0.0
    %203 = vmatprep.subr.mxu0 0.0
    %204 = vmatpush1.msra.mxu0 0.0
    %205 = vmatprep.subr.mxu0 0.0
    %206 = vmatpush1.msra.mxu0 0.0
    %207 = vmatprep.subr.mxu0 0.0
    %208 = vmatpush1.msra.mxu0 0.0
    %209 = vmatprep.subr.mxu0 0.0
    %210 = vmatpush1.msra.mxu0 0.0
    %211 = vmatprep.subr.mxu0 0.0
    %212 = vmatpush1.msra.mxu0 0.0
    %213 = vmatprep.subr.mxu0 0.0
    %214 = vmatpush1.msra.mxu0 0.0
    %215 = vmatprep.subr.mxu0 0.0
    %216 = vmatpush1.msra.mxu0 0.0
    %217 = vmatprep.subr.mxu0 0.0
    %218 = vmatpush1.msra.mxu0 0.0
    %219 = vmatprep.subr.mxu0 0.0
    %220 = vmatpush1.msra.mxu0 0.0
    %221 = vmatprep.subr.mxu0 0.0
    %222 = vmatpush1.msra.mxu0 0.0
    %223 = vmatprep.subr.mxu0 0.0
    %224 = vmatpush1.msra.mxu0 0.0
    %225 = vmatprep.subr.mxu0 0.0
    %226 = vmatpush1.msra.mxu0 0.0
    %227 = vmatprep.subr.mxu0 0.0
    %228 = vmatpush1.msra.mxu0 0.0
    %229 = vmatprep.subr.mxu0 0.0
    %230 = vmatpush1.msra.mxu0 0.0
    %231 = vmatprep.subr.mxu0 0.0
    %232 = vmatpush1.msra.mxu0 0.0
    %233 = vmatprep.subr.mxu0 0.0
    %234 = vmatpush1.msra.mxu0 0.0
    %235 = vmatprep.subr.mxu0 0.0
    %236 = vmatpush1.msra.mxu0 0.0
    %237 = vmatprep.mubr.f32.mxu0 0.0
    %238 = vmatmul.mubr.f32.gmra.mrb[0].mxu0 %v78
    %v239 = vpop.f32.mrb[0].mxu0
    %v240 = vadd.f32 %v75, %v239
    %v241 = vpop.f32.mrb[0].mxu0
    %242 = vmatprep.mubr.f32.mxu0 0.0
    %243 = vmatmul.mubr.f32.gmra.mrb[0].mxu0 %v81
    %v244 = vpop.f32.mrb[0].mxu0
    %v245 = vadd.f32 %v75, %v244
    %v246 = vpop.f32.mrb[0].mxu0
    %247 = vmatprep.mubr.f32.mxu0 0.0
    %248 = vmatmul.mubr.f32.gmra.mrb[0].mxu0 %v84
    %v249 = vpop.f32.mrb[0].mxu0
    %v250 = vadd.f32 %v75, %v249
    %v251 = vpop.f32.mrb[0].mxu0
    %252 = vmatprep.mubr.f32.mxu0 0.0
    %253 = vmatmul.mubr.f32.gmra.mrb[0].mxu0 %v87
    %v254 = vpop.f32.mrb[0].mxu0
    %v255 = vadd.f32 %v75, %v254
    %v256 = vpop.f32.mrb[0].mxu0
    %257 = vmatprep.mubr.f32.mxu0 0.0
    %258 = vmatmul.mubr.f32.gmra.mrb[0].mxu0 %v90
    %v259 = vpop.f32.mrb[0].mxu0
    %v260 = vadd.f32 %v75, %v259
    %v261 = vpop.f32.mrb[0].mxu0
    %262 = vmatprep.mubr.f32.mxu0 0.0
    %263 = vmatmul.mubr.f32.gmra.mrb[0].mxu0 %v93
    %v264 = vpop.f32.mrb[0].mxu0
    %v265 = vadd.f32 %v75, %v264
    %v266 = vpop.f32.mrb[0].mxu0
    %267 = vmatprep.mubr.f32.mxu0 0.0
    %268 = vmatmul.mubr.f32.gmra.mrb[0].mxu0 %v96
    %v269 = vpop.f32.mrb[0].mxu0
    %v270 = vadd.f32 %v75, %v269
    %v271 = vpop.f32.mrb[0].mxu0
    %272 = vmatprep.mubr.f32.mxu0 0.0
    %273 = vmatmul.mubr.f32.gmra.mrb[0].mxu0 %v99
    %v274 = vpop.f32.mrb[0].mxu0
    %v275 = vadd.f32 %v75, %v274
    %v276 = vpop.f32.mrb[0].mxu0
    %277 = vmatprep.mubr.f32.mxu0 0.0
    %278 = vmatmul.mubr.f32.gmra.mrb[0].mxu0 %v102
    %v279 = vpop.f32.mrb[0].mxu0
    %v280 = vadd.f32 %v75, %v279
    %v281 = vpop.f32.mrb[0].mxu0
    %282 = vmatprep.mubr.f32.mxu0 0.0
    %283 = vmatmul.mubr.f32.gmra.mrb[0].mxu0 %v105
    %v284 = vpop.f32.mrb[0].mxu0
    %v285 = vadd.f32 %v75, %v284
    %v286 = vpop.f32.mrb[0].mxu0
    %287 = vmatprep.mubr.f32.mxu0 0.0
    %288 = vmatmul.mubr.f32.gmra.mrb[0].mxu0 %v108
    %v289 = vpop.f32.mrb[0].mxu0
    %v290 = vadd.f32 %v75, %v289
    %v291 = vpop.f32.mrb[0].mxu0
    %292 = vmatprep.mubr.f32.mxu0 0.0
    %293 = vmatmul.mubr.f32.gmra.mrb[0].mxu0 %v111
    %v294 = vpop.f32.mrb[0].mxu0
    %v295 = vadd.f32 %v75, %v294
    %v296 = vpop.f32.mrb[0].mxu0
    %297 = vmatprep.mubr.f32.mxu0 0.0
    %298 = vmatmul.mubr.f32.gmra.mrb[0].mxu0 %v114
    %v299 = vpop.f32.mrb[0].mxu0
    %v300 = vadd.f32 %v75, %v299
    %v301 = vpop.f32.mrb[0].mxu0
    %302 = vmatprep.mubr.f32.mxu0 0.0
    %303 = vmatmul.mubr.f32.gmra.mrb[0].mxu0 %v117
    %v304 = vpop.f32.mrb[0].mxu0
    %v305 = vadd.f32 %v75, %v304
    %v306 = vpop.f32.mrb[0].mxu0
    %307 = vmatprep.mubr.f32.mxu0 0.0
    %308 = vmatmul.mubr.f32.gmra.mrb[0].mxu0 %v120
    %v309 = vpop.f32.mrb[0].mxu0
    %v310 = vadd.f32 %v75, %v309
    %v311 = vpop.f32.mrb[0].mxu0
    %312 = vmatprep.mubr.f32.mxu0 0.0
    %313 = vmatmul.mubr.f32.gmra.mrb[0].mxu0 %v123
    %v314 = vpop.f32.mrb[0].mxu0
    %v315 = vadd.f32 %v75, %v314
    %v316 = vpop.f32.mrb[0].mxu0
    %317 = vmatprep.mubr.f32.mxu0 0.0
    %318 = vmatmul.mubr.f32.gmra.mrb[0].mxu0 %v126
    %v319 = vpop.f32.mrb[0].mxu0
    %v320 = vadd.f32 %v75, %v319
    %v321 = vpop.f32.mrb[0].mxu0
    %322 = vmatprep.mubr.f32.mxu0 0.0
    %323 = vmatmul.mubr.f32.gmra.mrb[0].mxu0 %v129
    %v324 = vpop.f32.mrb[0].mxu0
    %v325 = vadd.f32 %v75, %v324
    %v326 = vpop.f32.mrb[0].mxu0
    %327 = vmatprep.mubr.f32.mxu0 0.0
    %328 = vmatmul.mubr.f32.gmra.mrb[0].mxu0 %v132
    %v329 = vpop.f32.mrb[0].mxu0
    %v330 = vadd.f32 %v75, %v329
    %v331 = vpop.f32.mrb[0].mxu0
    %332 = vmatprep.mubr.f32.mxu0 0.0
    %333 = vmatmul.mubr.f32.gmra.mrb[0].mxu0 %v135
    %v334 = vpop.f32.mrb[0].mxu0
    %v335 = vadd.f32 %v75, %v334
    %v336 = vpop.f32.mrb[0].mxu0
    %337 = vmatprep.mubr.f32.mxu0 0.0
    %338 = vmatmul.mubr.f32.gmra.mrb[0].mxu0 %v138
    %v339 = vpop.f32.mrb[0].mxu0
    %v340 = vadd.f32 %v75, %v339
    %v341 = vpop.f32.mrb[0].mxu0
    %342 = vmatprep.mubr.f32.mxu0 0.0
    %343 = vmatmul.mubr.f32.gmra.mrb[0].mxu0 %v141
    %v344 = vpop.f32.mrb[0].mxu0
    %v345 = vadd.f32 %v75, %v344
    %v346 = vpop.f32.mrb[0].mxu0
    %347 = vmatprep.mubr.f32.mxu0 0.0
    %348 = vmatmul.mubr.f32.gmra.mrb[0].mxu0 %v144
    %v349 = vpop.f32.mrb[0].mxu0
    %v350 = vadd.f32 %v75, %v349
    %v351 = vpop.f32.mrb[0].mxu0
    %352 = vmatprep.mubr.f32.mxu0 0.0
    %353 = vmatmul.mubr.f32.gmra.mrb[0].mxu0 %v147
    %v354 = vpop.f32.mrb[0].mxu0
    %v355 = vadd.f32 %v75, %v354
    %v356 = vpop.f32.mrb[0].mxu0
    %357 = vmatprep.mubr.f32.mxu0 0.0
    %358 = vmatmul.mubr.f32.gmra.mrb[0].mxu0 %v150
    %v359 = vpop.f32.mrb[0].mxu0
    %v360 = vadd.f32 %v75, %v359
    %v361 = vpop.f32.mrb[0].mxu0
    %362 = vmatprep.mubr.f32.mxu0 0.0
    %363 = vmatmul.mubr.f32.gmra.mrb[0].mxu0 %v153
    %v364 = vpop.f32.mrb[0].mxu0
    %v365 = vadd.f32 %v75, %v364
    %v366 = vpop.f32.mrb[0].mxu0
    %367 = vmatprep.mubr.f32.mxu0 0.0
    %368 = vmatmul.mubr.f32.gmra.mrb[0].mxu0 %v156
    %v369 = vpop.f32.mrb[0].mxu0
    %v370 = vadd.f32 %v75, %v369
    %v371 = vpop.f32.mrb[0].mxu0
    %372 = vmatprep.mubr.f32.mxu0 0.0
    %373 = vmatmul.mubr.f32.gmra.mrb[0].mxu0 %v159
    %v374 = vpop.f32.mrb[0].mxu0
    %v375 = vadd.f32 %v75, %v374
    %v376 = vpop.f32.mrb[0].mxu0
    %377 = vmatprep.mubr.f32.mxu0 0.0
    %378 = vmatmul.mubr.f32.gmra.mrb[0].mxu0 %v162
    %v379 = vpop.f32.mrb[0].mxu0
    %v380 = vadd.f32 %v75, %v379
    %v381 = vpop.f32.mrb[0].mxu0
    %382 = vmatprep.mubr.f32.mxu0 0.0
    %383 = vmatmul.mubr.f32.gmra.mrb[0].mxu0 %v165
    %v384 = vpop.f32.mrb[0].mxu0
    %v385 = vadd.f32 %v75, %v384
    %v386 = vpop.f32.mrb[0].mxu0
    %387 = vmatprep.mubr.f32.mxu0 0.0
    %388 = vmatmul.mubr.f32.gmra.mrb[0].mxu0 %v168
    %v389 = vpop.f32.mrb[0].mxu0
    %v390 = vadd.f32 %v75, %v389
    %v391 = vpop.f32.mrb[0].mxu0
    %392 = vmatprep.mubr.f32.mxu0 0.0
    %393 = vmatmul.mubr.f32.gmra.mrb[0].mxu0 %v171
    %v394 = vpop.f32.mrb[0].mxu0
    %v395 = vadd.f32 %v75, %v394
    %v396 = vpop.f32.mrb[0].mxu0
    %397 = vdwg.mxu0
    %v398 = vld [vmem:[%s2 + $0x1] sm:$0x1]
    %v399 = vld [vmem:[%s2 + $0x2] sm:$0x1]
    %v400 = vld [vmem:[%s3] sm:$0xff]
    %v401 = vld [vmem:[%s3 + $0x8] sm:$0xff]
    %v402 = vld [vmem:[%s3 + $0x10] sm:$0xff]
    %v403 = vld [vmem:[%s3 + $0x18] sm:$0xff]
    %v404 = vld [vmem:[%s3 + $0x20] sm:$0xff]
    %v405 = vld [vmem:[%s3 + $0x28] sm:$0xff]
    %v406 = vld [vmem:[%s3 + $0x30] sm:$0xff]
    %v407 = vld [vmem:[%s3 + $0x38] sm:$0xff]
    %v408 = vld [vmem:[%s3 + $0x40] sm:$0xff]
    %v409 = vld [vmem:[%s3 + $0x48] sm:$0xff]
    %v410 = vld [vmem:[%s3 + $0x50] sm:$0xff]
    %v411 = vld [vmem:[%s3 + $0x58] sm:$0xff]
    %v412 = vld [vmem:[%s3 + $0x60] sm:$0xff]
    %v413 = vld [vmem:[%s3 + $0x68] sm:$0xff]
    %v414 = vld [vmem:[%s3 + $0x70] sm:$0xff]
    %v415 = vld [vmem:[%s3 + $0x78] sm:$0xff]
    %v416 = vlaneseq
    %v417 = vshrl.u32 %v416, 7
    %v418 = vsub.s32 0, %v417
    %v419 = vrot.slane %v398, %v418
    %420 = vmatprep.subr.mxu0 0.0
    %421 = vmatpush1.msra.mxu0 %v400
    %422 = vmatprep.subr.mxu0 0.0
    %423 = vmatpush1.msra.mxu0 %v401
    %424 = vmatprep.subr.mxu0 0.0
    %425 = vmatpush1.msra.mxu0 %v402
    %426 = vmatprep.subr.mxu0 0.0
    %427 = vmatpush1.msra.mxu0 %v403
    %428 = vmatprep.subr.mxu0 0.0
    %429 = vmatpush1.msra.mxu0 %v404
    %430 = vmatprep.subr.mxu0 0.0
    %431 = vmatpush1.msra.mxu0 %v405
    %432 = vmatprep.subr.mxu0 0.0
    %433 = vmatpush1.msra.mxu0 %v406
    %434 = vmatprep.subr.mxu0 0.0
    %435 = vmatpush1.msra.mxu0 %v407
    %436 = vmatprep.subr.mxu0 0.0
    %437 = vmatpush1.msra.mxu0 %v408
    %438 = vmatprep.subr.mxu0 0.0
    %439 = vmatpush1.msra.mxu0 %v409
    %440 = vmatprep.subr.mxu0 0.0
    %441 = vmatpush1.msra.mxu0 %v410
    %442 = vmatprep.subr.mxu0 0.0
    %443 = vmatpush1.msra.mxu0 %v411
    %444 = vmatprep.subr.mxu0 0.0
    %445 = vmatpush1.msra.mxu0 %v412
    %446 = vmatprep.subr.mxu0 0.0
    %447 = vmatpush1.msra.mxu0 %v413
    %448 = vmatprep.subr.mxu0 0.0
    %449 = vmatpush1.msra.mxu0 %v414
    %450 = vmatprep.subr.mxu0 0.0
    %451 = vmatpush1.msra.mxu0 %v415
    %452 = vmatprep.subr.mxu0 0.0
    %453 = vmatpush1.msra.mxu0 0.0
    %454 = vmatprep.subr.mxu0 0.0
    %455 = vmatpush1.msra.mxu0 0.0
    %456 = vmatprep.subr.mxu0 0.0
    %457 = vmatpush1.msra.mxu0 0.0
    %458 = vmatprep.subr.mxu0 0.0
    %459 = vmatpush1.msra.mxu0 0.0
    %460 = vmatprep.subr.mxu0 0.0
    %461 = vmatpush1.msra.mxu0 0.0
    %462 = vmatprep.subr.mxu0 0.0
    %463 = vmatpush1.msra.mxu0 0.0
    %464 = vmatprep.subr.mxu0 0.0
    %465 = vmatpush1.msra.mxu0 0.0
    %466 = vmatprep.subr.mxu0 0.0
    %467 = vmatpush1.msra.mxu0 0.0
    %468 = vmatprep.subr.mxu0 0.0
    %469 = vmatpush1.msra.mxu0 0.0
    %470 = vmatprep.subr.mxu0 0.0
    %471 = vmatpush1.msra.mxu0 0.0
    %472 = vmatprep.subr.mxu0 0.0
    %473 = vmatpush1.msra.mxu0 0.0
    %474 = vmatprep.subr.mxu0 0.0
    %475 = vmatpush1.msra.mxu0 0.0
    %476 = vmatprep.subr.mxu0 0.0
    %477 = vmatpush1.msra.mxu0 0.0
    %478 = vmatprep.subr.mxu0 0.0
    %479 = vmatpush1.msra.mxu0 0.0
    %480 = vmatprep.subr.mxu0 0.0
    %481 = vmatpush1.msra.mxu0 0.0
    %482 = vmatprep.subr.mxu0 0.0
    %483 = vmatpush1.msra.mxu0 0.0
    %484 = vmatprep.mubr.f32.mxu0 0.0
    %485 = vmatmul.mubr.f32.gmra.mrb[0].mxu0 %v240
    %v486 = vpop.f32.mrb[0].mxu0
    %v487 = vadd.f32 %v419, %v486
    %v488 = vpop.f32.mrb[0].mxu0
    %489 = vmatprep.mubr.f32.mxu0 0.0
    %490 = vmatmul.mubr.f32.gmra.mrb[0].mxu0 %v245
    %v491 = vpop.f32.mrb[0].mxu0
    %v492 = vadd.f32 %v419, %v491
    %v493 = vpop.f32.mrb[0].mxu0
    %494 = vmatprep.mubr.f32.mxu0 0.0
    %495 = vmatmul.mubr.f32.gmra.mrb[0].mxu0 %v250
    %v496 = vpop.f32.mrb[0].mxu0
    %v497 = vadd.f32 %v419, %v496
    %v498 = vpop.f32.mrb[0].mxu0
    %499 = vmatprep.mubr.f32.mxu0 0.0
    %500 = vmatmul.mubr.f32.gmra.mrb[0].mxu0 %v255
    %v501 = vpop.f32.mrb[0].mxu0
    %v502 = vadd.f32 %v419, %v501
    %v503 = vpop.f32.mrb[0].mxu0
    %504 = vmatprep.mubr.f32.mxu0 0.0
    %505 = vmatmul.mubr.f32.gmra.mrb[0].mxu0 %v260
    %v506 = vpop.f32.mrb[0].mxu0
    %v507 = vadd.f32 %v419, %v506
    %v508 = vpop.f32.mrb[0].mxu0
    %509 = vmatprep.mubr.f32.mxu0 0.0
    %510 = vmatmul.mubr.f32.gmra.mrb[0].mxu0 %v265
    %v511 = vpop.f32.mrb[0].mxu0
    %v512 = vadd.f32 %v419, %v511
    %v513 = vpop.f32.mrb[0].mxu0
    %514 = vmatprep.mubr.f32.mxu0 0.0
    %515 = vmatmul.mubr.f32.gmra.mrb[0].mxu0 %v270
    %v516 = vpop.f32.mrb[0].mxu0
    %v517 = vadd.f32 %v419, %v516
    %v518 = vpop.f32.mrb[0].mxu0
    %519 = vmatprep.mubr.f32.mxu0 0.0
    %520 = vmatmul.mubr.f32.gmra.mrb[0].mxu0 %v275
    %v521 = vpop.f32.mrb[0].mxu0
    %v522 = vadd.f32 %v419, %v521
    %v523 = vpop.f32.mrb[0].mxu0
    %524 = vmatprep.mubr.f32.mxu0 0.0
    %525 = vmatmul.mubr.f32.gmra.mrb[0].mxu0 %v280
    %v526 = vpop.f32.mrb[0].mxu0
    %v527 = vadd.f32 %v419, %v526
    %v528 = vpop.f32.mrb[0].mxu0
    %529 = vmatprep.mubr.f32.mxu0 0.0
    %530 = vmatmul.mubr.f32.gmra.mrb[0].mxu0 %v285
    %v531 = vpop.f32.mrb[0].mxu0
    %v532 = vadd.f32 %v419, %v531
    %v533 = vpop.f32.mrb[0].mxu0
    %534 = vmatprep.mubr.f32.mxu0 0.0
    %535 = vmatmul.mubr.f32.gmra.mrb[0].mxu0 %v290
    %v536 = vpop.f32.mrb[0].mxu0
    %v537 = vadd.f32 %v419, %v536
    %v538 = vpop.f32.mrb[0].mxu0
    %539 = vmatprep.mubr.f32.mxu0 0.0
    %540 = vmatmul.mubr.f32.gmra.mrb[0].mxu0 %v295
    %v541 = vpop.f32.mrb[0].mxu0
    %v542 = vadd.f32 %v419, %v541
    %v543 = vpop.f32.mrb[0].mxu0
    %544 = vmatprep.mubr.f32.mxu0 0.0
    %545 = vmatmul.mubr.f32.gmra.mrb[0].mxu0 %v300
    %v546 = vpop.f32.mrb[0].mxu0
    %v547 = vadd.f32 %v419, %v546
    %v548 = vpop.f32.mrb[0].mxu0
    %549 = vmatprep.mubr.f32.mxu0 0.0
    %550 = vmatmul.mubr.f32.gmra.mrb[0].mxu0 %v305
    %v551 = vpop.f32.mrb[0].mxu0
    %v552 = vadd.f32 %v419, %v551
    %v553 = vpop.f32.mrb[0].mxu0
    %554 = vmatprep.mubr.f32.mxu0 0.0
    %555 = vmatmul.mubr.f32.gmra.mrb[0].mxu0 %v310
    %v556 = vpop.f32.mrb[0].mxu0
    %v557 = vadd.f32 %v419, %v556
    %v558 = vpop.f32.mrb[0].mxu0
    %559 = vmatprep.mubr.f32.mxu0 0.0
    %560 = vmatmul.mubr.f32.gmra.mrb[0].mxu0 %v315
    %v561 = vpop.f32.mrb[0].mxu0
    %v562 = vadd.f32 %v419, %v561
    %v563 = vpop.f32.mrb[0].mxu0
    %564 = vmatprep.mubr.f32.mxu0 0.0
    %565 = vmatmul.mubr.f32.gmra.mrb[0].mxu0 %v320
    %v566 = vpop.f32.mrb[0].mxu0
    %v567 = vadd.f32 %v419, %v566
    %v568 = vpop.f32.mrb[0].mxu0
    %569 = vmatprep.mubr.f32.mxu0 0.0
    %570 = vmatmul.mubr.f32.gmra.mrb[0].mxu0 %v325
    %v571 = vpop.f32.mrb[0].mxu0
    %v572 = vadd.f32 %v419, %v571
    %v573 = vpop.f32.mrb[0].mxu0
    %574 = vmatprep.mubr.f32.mxu0 0.0
    %575 = vmatmul.mubr.f32.gmra.mrb[0].mxu0 %v330
    %v576 = vpop.f32.mrb[0].mxu0
    %v577 = vadd.f32 %v419, %v576
    %v578 = vpop.f32.mrb[0].mxu0
    %579 = vmatprep.mubr.f32.mxu0 0.0
    %580 = vmatmul.mubr.f32.gmra.mrb[0].mxu0 %v335
    %v581 = vpop.f32.mrb[0].mxu0
    %v582 = vadd.f32 %v419, %v581
    %v583 = vpop.f32.mrb[0].mxu0
    %584 = vmatprep.mubr.f32.mxu0 0.0
    %585 = vmatmul.mubr.f32.gmra.mrb[0].mxu0 %v340
    %v586 = vpop.f32.mrb[0].mxu0
    %v587 = vadd.f32 %v419, %v586
    %v588 = vpop.f32.mrb[0].mxu0
    %589 = vmatprep.mubr.f32.mxu0 0.0
    %590 = vmatmul.mubr.f32.gmra.mrb[0].mxu0 %v345
    %v591 = vpop.f32.mrb[0].mxu0
    %v592 = vadd.f32 %v419, %v591
    %v593 = vpop.f32.mrb[0].mxu0
    %594 = vmatprep.mubr.f32.mxu0 0.0
    %595 = vmatmul.mubr.f32.gmra.mrb[0].mxu0 %v350
    %v596 = vpop.f32.mrb[0].mxu0
    %v597 = vadd.f32 %v419, %v596
    %v598 = vpop.f32.mrb[0].mxu0
    %599 = vmatprep.mubr.f32.mxu0 0.0
    %600 = vmatmul.mubr.f32.gmra.mrb[0].mxu0 %v355
    %v601 = vpop.f32.mrb[0].mxu0
    %v602 = vadd.f32 %v419, %v601
    %v603 = vpop.f32.mrb[0].mxu0
    %604 = vmatprep.mubr.f32.mxu0 0.0
    %605 = vmatmul.mubr.f32.gmra.mrb[0].mxu0 %v360
    %v606 = vpop.f32.mrb[0].mxu0
    %v607 = vadd.f32 %v419, %v606
    %v608 = vpop.f32.mrb[0].mxu0
    %609 = vmatprep.mubr.f32.mxu0 0.0
    %610 = vmatmul.mubr.f32.gmra.mrb[0].mxu0 %v365
    %v611 = vpop.f32.mrb[0].mxu0
    %v612 = vadd.f32 %v419, %v611
    %v613 = vpop.f32.mrb[0].mxu0
    %614 = vmatprep.mubr.f32.mxu0 0.0
    %615 = vmatmul.mubr.f32.gmra.mrb[0].mxu0 %v370
    %v616 = vpop.f32.mrb[0].mxu0
    %v617 = vadd.f32 %v419, %v616
    %v618 = vpop.f32.mrb[0].mxu0
    %619 = vmatprep.mubr.f32.mxu0 0.0
    %620 = vmatmul.mubr.f32.gmra.mrb[0].mxu0 %v375
    %v621 = vpop.f32.mrb[0].mxu0
    %v622 = vadd.f32 %v419, %v621
    %v623 = vpop.f32.mrb[0].mxu0
    %624 = vmatprep.mubr.f32.mxu0 0.0
    %625 = vmatmul.mubr.f32.gmra.mrb[0].mxu0 %v380
    %v626 = vpop.f32.mrb[0].mxu0
    %v627 = vadd.f32 %v419, %v626
    %v628 = vpop.f32.mrb[0].mxu0
    %629 = vmatprep.mubr.f32.mxu0 0.0
    %630 = vmatmul.mubr.f32.gmra.mrb[0].mxu0 %v385
    %v631 = vpop.f32.mrb[0].mxu0
    %v632 = vadd.f32 %v419, %v631
    %v633 = vpop.f32.mrb[0].mxu0
    %634 = vmatprep.mubr.f32.mxu0 0.0
    %635 = vmatmul.mubr.f32.gmra.mrb[0].mxu0 %v390
    %v636 = vpop.f32.mrb[0].mxu0
    %v637 = vadd.f32 %v419, %v636
    %v638 = vpop.f32.mrb[0].mxu0
    %639 = vmatprep.mubr.f32.mxu0 0.0
    %640 = vmatmul.mubr.f32.gmra.mrb[0].mxu0 %v395
    %v641 = vpop.f32.mrb[0].mxu0
    %v642 = vadd.f32 %v419, %v641
    %v643 = vpop.f32.mrb[0].mxu0
    %644 = vdwg.mxu0
    %v645 = vmax.f32 %v487, 0.0
    %v646 = vmax.f32 %v492, 0.0
    %v647 = vmax.f32 %v497, 0.0
    %v648 = vmax.f32 %v502, 0.0
    %v649 = vmax.f32 %v507, 0.0
    %v650 = vmax.f32 %v512, 0.0
    %v651 = vmax.f32 %v517, 0.0
    %v652 = vmax.f32 %v522, 0.0
    %v653 = vmax.f32 %v527, 0.0
    %v654 = vmax.f32 %v532, 0.0
    %v655 = vmax.f32 %v537, 0.0
    %v656 = vmax.f32 %v542, 0.0
    %v657 = vmax.f32 %v547, 0.0
    %v658 = vmax.f32 %v552, 0.0
    %v659 = vmax.f32 %v557, 0.0
    %v660 = vmax.f32 %v562, 0.0
    %v661 = vmax.f32 %v567, 0.0
    %v662 = vmax.f32 %v572, 0.0
    %v663 = vmax.f32 %v577, 0.0
    %v664 = vmax.f32 %v582, 0.0
    %v665 = vmax.f32 %v587, 0.0
    %v666 = vmax.f32 %v592, 0.0
    %v667 = vmax.f32 %v597, 0.0
    %v668 = vmax.f32 %v602, 0.0
    %v669 = vmax.f32 %v607, 0.0
    %v670 = vmax.f32 %v612, 0.0
    %v671 = vmax.f32 %v617, 0.0
    %v672 = vmax.f32 %v622, 0.0
    %v673 = vmax.f32 %v627, 0.0
    %v674 = vmax.f32 %v632, 0.0
    %v675 = vmax.f32 %v637, 0.0
    %v676 = vmax.f32 %v642, 0.0
    %v677 = vld [vmem:[#allocation2] sm:$0xff]
    %v678 = vld [vmem:[#allocation2 + $0x8] sm:$0xff]
    %v679 = vld [vmem:[#allocation2 + $0x10] sm:$0xff]
    %v680 = vld [vmem:[#allocation2 + $0x18] sm:$0xff]
    %v681 = vld [vmem:[#allocation2 + $0x20] sm:$0xff]
    %v682 = vld [vmem:[#allocation2 + $0x28] sm:$0xff]
    %v683 = vld [vmem:[#allocation2 + $0x30] sm:$0xff]
    %v684 = vld [vmem:[#allocation2 + $0x38] sm:$0xff]
    %v685 = vld [vmem:[#allocation2 + $0x40] sm:$0xff]
    %v686 = vld [vmem:[#allocation2 + $0x48] sm:$0xff]
    %v687 = vld [vmem:[#allocation2 + $0x50] sm:$0xff]
    %v688 = vld [vmem:[#allocation2 + $0x58] sm:$0xff]
    %v689 = vld [vmem:[#allocation2 + $0x60] sm:$0xff]
    %v690 = vld [vmem:[#allocation2 + $0x68] sm:$0xff]
    %v691 = vld [vmem:[#allocation2 + $0x70] sm:$0xff]
    %v692 = vld [vmem:[#allocation2 + $0x78] sm:$0xff]
    %v693 = vlaneseq
    %v694 = vshrl.u32 %v693, 7
    %v695 = vsub.s32 0, %v694
    %v696 = vrot.slane %v399, %v695
    %697 = vmatprep.subr.mxu0 0.0
    %698 = vmatpush1.msra.mxu0 %v677
    %699 = vmatprep.subr.mxu0 0.0
    %700 = vmatpush1.msra.mxu0 %v678
    %701 = vmatprep.subr.mxu0 0.0
    %702 = vmatpush1.msra.mxu0 %v679
    %703 = vmatprep.subr.mxu0 0.0
    %704 = vmatpush1.msra.mxu0 %v680
    %705 = vmatprep.subr.mxu0 0.0
    %706 = vmatpush1.msra.mxu0 %v681
    %707 = vmatprep.subr.mxu0 0.0
    %708 = vmatpush1.msra.mxu0 %v682
    %709 = vmatprep.subr.mxu0 0.0
    %710 = vmatpush1.msra.mxu0 %v683
    %711 = vmatprep.subr.mxu0 0.0
    %712 = vmatpush1.msra.mxu0 %v684
    %713 = vmatprep.subr.mxu0 0.0
    %714 = vmatpush1.msra.mxu0 %v685
    %715 = vmatprep.subr.mxu0 0.0
    %716 = vmatpush1.msra.mxu0 %v686
    %717 = vmatprep.subr.mxu0 0.0
    %718 = vmatpush1.msra.mxu0 %v687
    %719 = vmatprep.subr.mxu0 0.0
    %720 = vmatpush1.msra.mxu0 %v688
    %721 = vmatprep.subr.mxu0 0.0
    %722 = vmatpush1.msra.mxu0 %v689
    %723 = vmatprep.subr.mxu0 0.0
    %724 = vmatpush1.msra.mxu0 %v690
    %725 = vmatprep.subr.mxu0 0.0
    %726 = vmatpush1.msra.mxu0 %v691
    %727 = vmatprep.subr.mxu0 0.0
    %728 = vmatpush1.msra.mxu0 %v692
    %729 = vmatprep.subr.mxu0 0.0
    %730 = vmatpush1.msra.mxu0 0.0
    %731 = vmatprep.subr.mxu0 0.0
    %732 = vmatpush1.msra.mxu0 0.0
    %733 = vmatprep.subr.mxu0 0.0
    %734 = vmatpush1.msra.mxu0 0.0
    %735 = vmatprep.subr.mxu0 0.0
    %736 = vmatpush1.msra.mxu0 0.0
    %737 = vmatprep.subr.mxu0 0.0
    %738 = vmatpush1.msra.mxu0 0.0
    %739 = vmatprep.subr.mxu0 0.0
    %740 = vmatpush1.msra.mxu0 0.0
    %741 = vmatprep.subr.mxu0 0.0
    %742 = vmatpush1.msra.mxu0 0.0
    %743 = vmatprep.subr.mxu0 0.0
    %744 = vmatpush1.msra.mxu0 0.0
    %745 = vmatprep.subr.mxu0 0.0
    %746 = vmatpush1.msra.mxu0 0.0
    %747 = vmatprep.subr.mxu0 0.0
    %748 = vmatpush1.msra.mxu0 0.0
    %749 = vmatprep.subr.mxu0 0.0
    %750 = vmatpush1.msra.mxu0 0.0
    %751 = vmatprep.subr.mxu0 0.0
    %752 = vmatpush1.msra.mxu0 0.0
    %753 = vmatprep.subr.mxu0 0.0
    %754 = vmatpush1.msra.mxu0 0.0
    %755 = vmatprep.subr.mxu0 0.0
    %756 = vmatpush1.msra.mxu0 0.0
    %757 = vmatprep.subr.mxu0 0.0
    %758 = vmatpush1.msra.mxu0 0.0
    %759 = vmatprep.subr.mxu0 0.0
    %760 = vmatpush1.msra.mxu0 0.0
    %761 = vmatprep.mubr.f32.mxu0 0.0
    %762 = vmatmul.mubr.f32.gmra.mrb[0].mxu0 %v645
    %v763 = vpop.f32.mrb[0].mxu0
    %v764 = vadd.f32 %v696, %v763
    %v765 = vpop.f32.mrb[0].mxu0
    %766 = vmatprep.mubr.f32.mxu0 0.0
    %767 = vmatmul.mubr.f32.gmra.mrb[0].mxu0 %v646
    %v768 = vpop.f32.mrb[0].mxu0
    %v769 = vadd.f32 %v696, %v768
    %v770 = vpop.f32.mrb[0].mxu0
    %771 = vmatprep.mubr.f32.mxu0 0.0
    %772 = vmatmul.mubr.f32.gmra.mrb[0].mxu0 %v647
    %v773 = vpop.f32.mrb[0].mxu0
    %v774 = vadd.f32 %v696, %v773
    %v775 = vpop.f32.mrb[0].mxu0
    %776 = vmatprep.mubr.f32.mxu0 0.0
    %777 = vmatmul.mubr.f32.gmra.mrb[0].mxu0 %v648
    %v778 = vpop.f32.mrb[0].mxu0
    %v779 = vadd.f32 %v696, %v778
    %v780 = vpop.f32.mrb[0].mxu0
    %781 = vmatprep.mubr.f32.mxu0 0.0
    %782 = vmatmul.mubr.f32.gmra.mrb[0].mxu0 %v649
    %v783 = vpop.f32.mrb[0].mxu0
    %v784 = vadd.f32 %v696, %v783
    %v785 = vpop.f32.mrb[0].mxu0
    %786 = vmatprep.mubr.f32.mxu0 0.0
    %787 = vmatmul.mubr.f32.gmra.mrb[0].mxu0 %v650
    %v788 = vpop.f32.mrb[0].mxu0
    %v789 = vadd.f32 %v696, %v788
    %v790 = vpop.f32.mrb[0].mxu0
    %791 = vmatprep.mubr.f32.mxu0 0.0
    %792 = vmatmul.mubr.f32.gmra.mrb[0].mxu0 %v651
    %v793 = vpop.f32.mrb[0].mxu0
    %v794 = vadd.f32 %v696, %v793
    %v795 = vpop.f32.mrb[0].mxu0
    %796 = vmatprep.mubr.f32.mxu0 0.0
    %797 = vmatmul.mubr.f32.gmra.mrb[0].mxu0 %v652
    %v798 = vpop.f32.mrb[0].mxu0
    %v799 = vadd.f32 %v696, %v798
    %v800 = vpop.f32.mrb[0].mxu0
    %801 = vmatprep.mubr.f32.mxu0 0.0
    %802 = vmatmul.mubr.f32.gmra.mrb[0].mxu0 %v653
    %v803 = vpop.f32.mrb[0].mxu0
    %v804 = vadd.f32 %v696, %v803
    %v805 = vpop.f32.mrb[0].mxu0
    %806 = vmatprep.mubr.f32.mxu0 0.0
    %807 = vmatmul.mubr.f32.gmra.mrb[0].mxu0 %v654
    %v808 = vpop.f32.mrb[0].mxu0
    %v809 = vadd.f32 %v696, %v808
    %v810 = vpop.f32.mrb[0].mxu0
    %811 = vmatprep.mubr.f32.mxu0 0.0
    %812 = vmatmul.mubr.f32.gmra.mrb[0].mxu0 %v655
    %v813 = vpop.f32.mrb[0].mxu0
    %v814 = vadd.f32 %v696, %v813
    %v815 = vpop.f32.mrb[0].mxu0
    %816 = vmatprep.mubr.f32.mxu0 0.0
    %817 = vmatmul.mubr.f32.gmra.mrb[0].mxu0 %v656
    %v818 = vpop.f32.mrb[0].mxu0
    %v819 = vadd.f32 %v696, %v818
    %v820 = vpop.f32.mrb[0].mxu0
    %821 = vmatprep.mubr.f32.mxu0 0.0
    %822 = vmatmul.mubr.f32.gmra.mrb[0].mxu0 %v657
    %v823 = vpop.f32.mrb[0].mxu0
    %v824 = vadd.f32 %v696, %v823
    %v825 = vpop.f32.mrb[0].mxu0
    %826 = vmatprep.mubr.f32.mxu0 0.0
    %827 = vmatmul.mubr.f32.gmra.mrb[0].mxu0 %v658
    %v828 = vpop.f32.mrb[0].mxu0
    %v829 = vadd.f32 %v696, %v828
    %v830 = vpop.f32.mrb[0].mxu0
    %831 = vmatprep.mubr.f32.mxu0 0.0
    %832 = vmatmul.mubr.f32.gmra.mrb[0].mxu0 %v659
    %v833 = vpop.f32.mrb[0].mxu0
    %v834 = vadd.f32 %v696, %v833
    %v835 = vpop.f32.mrb[0].mxu0
    %836 = vmatprep.mubr.f32.mxu0 0.0
    %837 = vmatmul.mubr.f32.gmra.mrb[0].mxu0 %v660
    %v838 = vpop.f32.mrb[0].mxu0
    %v839 = vadd.f32 %v696, %v838
    %v840 = vpop.f32.mrb[0].mxu0
    %841 = vmatprep.mubr.f32.mxu0 0.0
    %842 = vmatmul.mubr.f32.gmra.mrb[0].mxu0 %v661
    %v843 = vpop.f32.mrb[0].mxu0
    %v844 = vadd.f32 %v696, %v843
    %v845 = vpop.f32.mrb[0].mxu0
    %846 = vmatprep.mubr.f32.mxu0 0.0
    %847 = vmatmul.mubr.f32.gmra.mrb[0].mxu0 %v662
    %v848 = vpop.f32.mrb[0].mxu0
    %v849 = vadd.f32 %v696, %v848
    %v850 = vpop.f32.mrb[0].mxu0
    %851 = vmatprep.mubr.f32.mxu0 0.0
    %852 = vmatmul.mubr.f32.gmra.mrb[0].mxu0 %v663
    %v853 = vpop.f32.mrb[0].mxu0
    %v854 = vadd.f32 %v696, %v853
    %v855 = vpop.f32.mrb[0].mxu0
    %856 = vmatprep.mubr.f32.mxu0 0.0
    %857 = vmatmul.mubr.f32.gmra.mrb[0].mxu0 %v664
    %v858 = vpop.f32.mrb[0].mxu0
    %v859 = vadd.f32 %v696, %v858
    %v860 = vpop.f32.mrb[0].mxu0
    %861 = vmatprep.mubr.f32.mxu0 0.0
    %862 = vmatmul.mubr.f32.gmra.mrb[0].mxu0 %v665
    %v863 = vpop.f32.mrb[0].mxu0
    %v864 = vadd.f32 %v696, %v863
    %v865 = vpop.f32.mrb[0].mxu0
    %866 = vmatprep.mubr.f32.mxu0 0.0
    %867 = vmatmul.mubr.f32.gmra.mrb[0].mxu0 %v666
    %v868 = vpop.f32.mrb[0].mxu0
    %v869 = vadd.f32 %v696, %v868
    %v870 = vpop.f32.mrb[0].mxu0
    %871 = vmatprep.mubr.f32.mxu0 0.0
    %872 = vmatmul.mubr.f32.gmra.mrb[0].mxu0 %v667
    %v873 = vpop.f32.mrb[0].mxu0
    %v874 = vadd.f32 %v696, %v873
    %v875 = vpop.f32.mrb[0].mxu0
    %876 = vmatprep.mubr.f32.mxu0 0.0
    %877 = vmatmul.mubr.f32.gmra.mrb[0].mxu0 %v668
    %v878 = vpop.f32.mrb[0].mxu0
    %v879 = vadd.f32 %v696, %v878
    %v880 = vpop.f32.mrb[0].mxu0
    %881 = vmatprep.mubr.f32.mxu0 0.0
    %882 = vmatmul.mubr.f32.gmra.mrb[0].mxu0 %v669
    %v883 = vpop.f32.mrb[0].mxu0
    %v884 = vadd.f32 %v696, %v883
    %v885 = vpop.f32.mrb[0].mxu0
    %886 = vmatprep.mubr.f32.mxu0 0.0
    %887 = vmatmul.mubr.f32.gmra.mrb[0].mxu0 %v670
    %v888 = vpop.f32.mrb[0].mxu0
    %v889 = vadd.f32 %v696, %v888
    %v890 = vpop.f32.mrb[0].mxu0
    %891 = vmatprep.mubr.f32.mxu0 0.0
    %892 = vmatmul.mubr.f32.gmra.mrb[0].mxu0 %v671
    %v893 = vpop.f32.mrb[0].mxu0
    %v894 = vadd.f32 %v696, %v893
    %v895 = vpop.f32.mrb[0].mxu0
    %896 = vmatprep.mubr.f32.mxu0 0.0
    %897 = vmatmul.mubr.f32.gmra.mrb[0].mxu0 %v672
    %v898 = vpop.f32.mrb[0].mxu0
    %v899 = vadd.f32 %v696, %v898
    %v900 = vpop.f32.mrb[0].mxu0
    %901 = vmatprep.mubr.f32.mxu0 0.0
    %902 = vmatmul.mubr.f32.gmra.mrb[0].mxu0 %v673
    %v903 = vpop.f32.mrb[0].mxu0
    %v904 = vadd.f32 %v696, %v903
    %v905 = vpop.f32.mrb[0].mxu0
    %906 = vmatprep.mubr.f32.mxu0 0.0
    %907 = vmatmul.mubr.f32.gmra.mrb[0].mxu0 %v674
    %v908 = vpop.f32.mrb[0].mxu0
    %v909 = vadd.f32 %v696, %v908
    %v910 = vpop.f32.mrb[0].mxu0
    %911 = vmatprep.mubr.f32.mxu0 0.0
    %912 = vmatmul.mubr.f32.gmra.mrb[0].mxu0 %v675
    %v913 = vpop.f32.mrb[0].mxu0
    %v914 = vadd.f32 %v696, %v913
    %v915 = vpop.f32.mrb[0].mxu0
    %916 = vmatprep.mubr.f32.mxu0 0.0
    %917 = vmatmul.mubr.f32.gmra.mrb[0].mxu0 %v676
    %v918 = vpop.f32.mrb[0].mxu0
    %v919 = vadd.f32 %v696, %v918
    %v920 = vpop.f32.mrb[0].mxu0
    %921 = vdwg.mxu0
    %v922 = vld [vmem:[%s2 + $0x3] sm:$0x1]
    %v923 = vld [vmem:[%s2 + $0x4] sm:$0x1]
    %s924 = scalar_lea.vmem %s3, 128
    %v925 = vld [vmem:[%s924] sm:$0xff]
    %v926 = vld [vmem:[%s924 + $0x8] sm:$0xff]
    %v927 = vld [vmem:[%s924 + $0x10] sm:$0xff]
    %v928 = vld [vmem:[%s924 + $0x18] sm:$0xff]
    %v929 = vld [vmem:[%s924 + $0x20] sm:$0xff]
    %v930 = vld [vmem:[%s924 + $0x28] sm:$0xff]
    %v931 = vld [vmem:[%s924 + $0x30] sm:$0xff]
    %v932 = vld [vmem:[%s924 + $0x38] sm:$0xff]
    %v933 = vld [vmem:[%s924 + $0x40] sm:$0xff]
    %v934 = vld [vmem:[%s924 + $0x48] sm:$0xff]
    %v935 = vld [vmem:[%s924 + $0x50] sm:$0xff]
    %v936 = vld [vmem:[%s924 + $0x58] sm:$0xff]
    %v937 = vld [vmem:[%s924 + $0x60] sm:$0xff]
    %v938 = vld [vmem:[%s924 + $0x68] sm:$0xff]
    %v939 = vld [vmem:[%s924 + $0x70] sm:$0xff]
    %v940 = vld [vmem:[%s924 + $0x78] sm:$0xff]
    %v941 = vlaneseq
    %v942 = vshrl.u32 %v941, 7
    %v943 = vsub.s32 0, %v942
    %v944 = vrot.slane %v922, %v943
    %945 = vmatprep.subr.mxu0 0.0
    %946 = vmatpush1.msra.mxu0 %v925
    %947 = vmatprep.subr.mxu0 0.0
    %948 = vmatpush1.msra.mxu0 %v926
    %949 = vmatprep.subr.mxu0 0.0
    %950 = vmatpush1.msra.mxu0 %v927
    %951 = vmatprep.subr.mxu0 0.0
    %952 = vmatpush1.msra.mxu0 %v928
    %953 = vmatprep.subr.mxu0 0.0
    %954 = vmatpush1.msra.mxu0 %v929
    %955 = vmatprep.subr.mxu0 0.0
    %956 = vmatpush1.msra.mxu0 %v930
    %957 = vmatprep.subr.mxu0 0.0
    %958 = vmatpush1.msra.mxu0 %v931
    %959 = vmatprep.subr.mxu0 0.0
    %960 = vmatpush1.msra.mxu0 %v932
    %961 = vmatprep.subr.mxu0 0.0
    %962 = vmatpush1.msra.mxu0 %v933
    %963 = vmatprep.subr.mxu0 0.0
    %964 = vmatpush1.msra.mxu0 %v934
    %965 = vmatprep.subr.mxu0 0.0
    %966 = vmatpush1.msra.mxu0 %v935
    %967 = vmatprep.subr.mxu0 0.0
    %968 = vmatpush1.msra.mxu0 %v936
    %969 = vmatprep.subr.mxu0 0.0
    %970 = vmatpush1.msra.mxu0 %v937
    %971 = vmatprep.subr.mxu0 0.0
    %972 = vmatpush1.msra.mxu0 %v938
    %973 = vmatprep.subr.mxu0 0.0
    %974 = vmatpush1.msra.mxu0 %v939
    %975 = vmatprep.subr.mxu0 0.0
    %976 = vmatpush1.msra.mxu0 %v940
    %977 = vmatprep.subr.mxu0 0.0
    %978 = vmatpush1.msra.mxu0 0.0
    %979 = vmatprep.subr.mxu0 0.0
    %980 = vmatpush1.msra.mxu0 0.0
    %981 = vmatprep.subr.mxu0 0.0
    %982 = vmatpush1.msra.mxu0 0.0
    %983 = vmatprep.subr.mxu0 0.0
    %984 = vmatpush1.msra.mxu0 0.0
    %985 = vmatprep.subr.mxu0 0.0
    %986 = vmatpush1.msra.mxu0 0.0
    %987 = vmatprep.subr.mxu0 0.0
    %988 = vmatpush1.msra.mxu0 0.0
    %989 = vmatprep.subr.mxu0 0.0
    %990 = vmatpush1.msra.mxu0 0.0
    %991 = vmatprep.subr.mxu0 0.0
    %992 = vmatpush1.msra.mxu0 0.0
    %993 = vmatprep.subr.mxu0 0.0
    %994 = vmatpush1.msra.mxu0 0.0
    %995 = vmatprep.subr.mxu0 0.0
    %996 = vmatpush1.msra.mxu0 0.0
    %997 = vmatprep.subr.mxu0 0.0
    %998 = vmatpush1.msra.mxu0 0.0
    %999 = vmatprep.subr.mxu0 0.0
    %1000 = vmatpush1.msra.mxu0 0.0
    %1001 = vmatprep.subr.mxu0 0.0
    %1002 = vmatpush1.msra.mxu0 0.0
    %1003 = vmatprep.subr.mxu0 0.0
    %1004 = vmatpush1.msra.mxu0 0.0
    %1005 = vmatprep.subr.mxu0 0.0
    %1006 = vmatpush1.msra.mxu0 0.0
    %1007 = vmatprep.subr.mxu0 0.0
    %1008 = vmatpush1.msra.mxu0 0.0
    %1009 = vmatprep.mubr.f32.mxu0 0.0
    %1010 = vmatmul.mubr.f32.gmra.mrb[0].mxu0 %v764
    %v1011 = vpop.f32.mrb[0].mxu0
    %v1012 = vadd.f32 %v944, %v1011
    %v1013 = vpop.f32.mrb[0].mxu0
    %1014 = vmatprep.mubr.f32.mxu0 0.0
    %1015 = vmatmul.mubr.f32.gmra.mrb[0].mxu0 %v769
    %v1016 = vpop.f32.mrb[0].mxu0
    %v1017 = vadd.f32 %v944, %v1016
    %v1018 = vpop.f32.mrb[0].mxu0
    %1019 = vmatprep.mubr.f32.mxu0 0.0
    %1020 = vmatmul.mubr.f32.gmra.mrb[0].mxu0 %v774
    %v1021 = vpop.f32.mrb[0].mxu0
    %v1022 = vadd.f32 %v944, %v1021
    %v1023 = vpop.f32.mrb[0].mxu0
    %1024 = vmatprep.mubr.f32.mxu0 0.0
    %1025 = vmatmul.mubr.f32.gmra.mrb[0].mxu0 %v779
    %v1026 = vpop.f32.mrb[0].mxu0
    %v1027 = vadd.f32 %v944, %v1026
    %v1028 = vpop.f32.mrb[0].mxu0
    %1029 = vmatprep.mubr.f32.mxu0 0.0
    %1030 = vmatmul.mubr.f32.gmra.mrb[0].mxu0 %v784
    %v1031 = vpop.f32.mrb[0].mxu0
    %v1032 = vadd.f32 %v944, %v1031
    %v1033 = vpop.f32.mrb[0].mxu0
    %1034 = vmatprep.mubr.f32.mxu0 0.0
    %1035 = vmatmul.mubr.f32.gmra.mrb[0].mxu0 %v789
    %v1036 = vpop.f32.mrb[0].mxu0
    %v1037 = vadd.f32 %v944, %v1036
    %v1038 = vpop.f32.mrb[0].mxu0
    %1039 = vmatprep.mubr.f32.mxu0 0.0
    %1040 = vmatmul.mubr.f32.gmra.mrb[0].mxu0 %v794
    %v1041 = vpop.f32.mrb[0].mxu0
    %v1042 = vadd.f32 %v944, %v1041
    %v1043 = vpop.f32.mrb[0].mxu0
    %1044 = vmatprep.mubr.f32.mxu0 0.0
    %1045 = vmatmul.mubr.f32.gmra.mrb[0].mxu0 %v799
    %v1046 = vpop.f32.mrb[0].mxu0
    %v1047 = vadd.f32 %v944, %v1046
    %v1048 = vpop.f32.mrb[0].mxu0
    %1049 = vmatprep.mubr.f32.mxu0 0.0
    %1050 = vmatmul.mubr.f32.gmra.mrb[0].mxu0 %v804
    %v1051 = vpop.f32.mrb[0].mxu0
    %v1052 = vadd.f32 %v944, %v1051
    %v1053 = vpop.f32.mrb[0].mxu0
    %1054 = vmatprep.mubr.f32.mxu0 0.0
    %1055 = vmatmul.mubr.f32.gmra.mrb[0].mxu0 %v809
    %v1056 = vpop.f32.mrb[0].mxu0
    %v1057 = vadd.f32 %v944, %v1056
    %v1058 = vpop.f32.mrb[0].mxu0
    %1059 = vmatprep.mubr.f32.mxu0 0.0
    %1060 = vmatmul.mubr.f32.gmra.mrb[0].mxu0 %v814
    %v1061 = vpop.f32.mrb[0].mxu0
    %v1062 = vadd.f32 %v944, %v1061
    %v1063 = vpop.f32.mrb[0].mxu0
    %1064 = vmatprep.mubr.f32.mxu0 0.0
    %1065 = vmatmul.mubr.f32.gmra.mrb[0].mxu0 %v819
    %v1066 = vpop.f32.mrb[0].mxu0
    %v1067 = vadd.f32 %v944, %v1066
    %v1068 = vpop.f32.mrb[0].mxu0
    %1069 = vmatprep.mubr.f32.mxu0 0.0
    %1070 = vmatmul.mubr.f32.gmra.mrb[0].mxu0 %v824
    %v1071 = vpop.f32.mrb[0].mxu0
    %v1072 = vadd.f32 %v944, %v1071
    %v1073 = vpop.f32.mrb[0].mxu0
    %1074 = vmatprep.mubr.f32.mxu0 0.0
    %1075 = vmatmul.mubr.f32.gmra.mrb[0].mxu0 %v829
    %v1076 = vpop.f32.mrb[0].mxu0
    %v1077 = vadd.f32 %v944, %v1076
    %v1078 = vpop.f32.mrb[0].mxu0
    %1079 = vmatprep.mubr.f32.mxu0 0.0
    %1080 = vmatmul.mubr.f32.gmra.mrb[0].mxu0 %v834
    %v1081 = vpop.f32.mrb[0].mxu0
    %v1082 = vadd.f32 %v944, %v1081
    %v1083 = vpop.f32.mrb[0].mxu0
    %1084 = vmatprep.mubr.f32.mxu0 0.0
    %1085 = vmatmul.mubr.f32.gmra.mrb[0].mxu0 %v839
    %v1086 = vpop.f32.mrb[0].mxu0
    %v1087 = vadd.f32 %v944, %v1086
    %v1088 = vpop.f32.mrb[0].mxu0
    %1089 = vmatprep.mubr.f32.mxu0 0.0
    %1090 = vmatmul.mubr.f32.gmra.mrb[0].mxu0 %v844
    %v1091 = vpop.f32.mrb[0].mxu0
    %v1092 = vadd.f32 %v944, %v1091
    %v1093 = vpop.f32.mrb[0].mxu0
    %1094 = vmatprep.mubr.f32.mxu0 0.0
    %1095 = vmatmul.mubr.f32.gmra.mrb[0].mxu0 %v849
    %v1096 = vpop.f32.mrb[0].mxu0
    %v1097 = vadd.f32 %v944, %v1096
    %v1098 = vpop.f32.mrb[0].mxu0
    %1099 = vmatprep.mubr.f32.mxu0 0.0
    %1100 = vmatmul.mubr.f32.gmra.mrb[0].mxu0 %v854
    %v1101 = vpop.f32.mrb[0].mxu0
    %v1102 = vadd.f32 %v944, %v1101
    %v1103 = vpop.f32.mrb[0].mxu0
    %1104 = vmatprep.mubr.f32.mxu0 0.0
    %1105 = vmatmul.mubr.f32.gmra.mrb[0].mxu0 %v859
    %v1106 = vpop.f32.mrb[0].mxu0
    %v1107 = vadd.f32 %v944, %v1106
    %v1108 = vpop.f32.mrb[0].mxu0
    %1109 = vmatprep.mubr.f32.mxu0 0.0
    %1110 = vmatmul.mubr.f32.gmra.mrb[0].mxu0 %v864
    %v1111 = vpop.f32.mrb[0].mxu0
    %v1112 = vadd.f32 %v944, %v1111
    %v1113 = vpop.f32.mrb[0].mxu0
    %1114 = vmatprep.mubr.f32.mxu0 0.0
    %1115 = vmatmul.mubr.f32.gmra.mrb[0].mxu0 %v869
    %v1116 = vpop.f32.mrb[0].mxu0
    %v1117 = vadd.f32 %v944, %v1116
    %v1118 = vpop.f32.mrb[0].mxu0
    %1119 = vmatprep.mubr.f32.mxu0 0.0
    %1120 = vmatmul.mubr.f32.gmra.mrb[0].mxu0 %v874
    %v1121 = vpop.f32.mrb[0].mxu0
    %v1122 = vadd.f32 %v944, %v1121
    %v1123 = vpop.f32.mrb[0].mxu0
    %1124 = vmatprep.mubr.f32.mxu0 0.0
    %1125 = vmatmul.mubr.f32.gmra.mrb[0].mxu0 %v879
    %v1126 = vpop.f32.mrb[0].mxu0
    %v1127 = vadd.f32 %v944, %v1126
    %v1128 = vpop.f32.mrb[0].mxu0
    %1129 = vmatprep.mubr.f32.mxu0 0.0
    %1130 = vmatmul.mubr.f32.gmra.mrb[0].mxu0 %v884
    %v1131 = vpop.f32.mrb[0].mxu0
    %v1132 = vadd.f32 %v944, %v1131
    %v1133 = vpop.f32.mrb[0].mxu0
    %1134 = vmatprep.mubr.f32.mxu0 0.0
    %1135 = vmatmul.mubr.f32.gmra.mrb[0].mxu0 %v889
    %v1136 = vpop.f32.mrb[0].mxu0
    %v1137 = vadd.f32 %v944, %v1136
    %v1138 = vpop.f32.mrb[0].mxu0
    %1139 = vmatprep.mubr.f32.mxu0 0.0
    %1140 = vmatmul.mubr.f32.gmra.mrb[0].mxu0 %v894
    %v1141 = vpop.f32.mrb[0].mxu0
    %v1142 = vadd.f32 %v944, %v1141
    %v1143 = vpop.f32.mrb[0].mxu0
    %1144 = vmatprep.mubr.f32.mxu0 0.0
    %1145 = vmatmul.mubr.f32.gmra.mrb[0].mxu0 %v899
    %v1146 = vpop.f32.mrb[0].mxu0
    %v1147 = vadd.f32 %v944, %v1146
    %v1148 = vpop.f32.mrb[0].mxu0
    %1149 = vmatprep.mubr.f32.mxu0 0.0
    %1150 = vmatmul.mubr.f32.gmra.mrb[0].mxu0 %v904
    %v1151 = vpop.f32.mrb[0].mxu0
    %v1152 = vadd.f32 %v944, %v1151
    %v1153 = vpop.f32.mrb[0].mxu0
    %1154 = vmatprep.mubr.f32.mxu0 0.0
    %1155 = vmatmul.mubr.f32.gmra.mrb[0].mxu0 %v909
    %v1156 = vpop.f32.mrb[0].mxu0
    %v1157 = vadd.f32 %v944, %v1156
    %v1158 = vpop.f32.mrb[0].mxu0
    %1159 = vmatprep.mubr.f32.mxu0 0.0
    %1160 = vmatmul.mubr.f32.gmra.mrb[0].mxu0 %v914
    %v1161 = vpop.f32.mrb[0].mxu0
    %v1162 = vadd.f32 %v944, %v1161
    %v1163 = vpop.f32.mrb[0].mxu0
    %1164 = vmatprep.mubr.f32.mxu0 0.0
    %1165 = vmatmul.mubr.f32.gmra.mrb[0].mxu0 %v919
    %v1166 = vpop.f32.mrb[0].mxu0
    %v1167 = vadd.f32 %v944, %v1166
    %v1168 = vpop.f32.mrb[0].mxu0
    %1169 = vdwg.mxu0
    %v1170 = vmax.f32 %v1012, 0.0
    %v1171 = vmax.f32 %v1017, 0.0
    %v1172 = vmax.f32 %v1022, 0.0
    %v1173 = vmax.f32 %v1027, 0.0
    %v1174 = vmax.f32 %v1032, 0.0
    %v1175 = vmax.f32 %v1037, 0.0
    %v1176 = vmax.f32 %v1042, 0.0
    %v1177 = vmax.f32 %v1047, 0.0
    %v1178 = vmax.f32 %v1052, 0.0
    %v1179 = vmax.f32 %v1057, 0.0
    %v1180 = vmax.f32 %v1062, 0.0
    %v1181 = vmax.f32 %v1067, 0.0
    %v1182 = vmax.f32 %v1072, 0.0
    %v1183 = vmax.f32 %v1077, 0.0
    %v1184 = vmax.f32 %v1082, 0.0
    %v1185 = vmax.f32 %v1087, 0.0
    %v1186 = vmax.f32 %v1092, 0.0
    %v1187 = vmax.f32 %v1097, 0.0
    %v1188 = vmax.f32 %v1102, 0.0
    %v1189 = vmax.f32 %v1107, 0.0
    %v1190 = vmax.f32 %v1112, 0.0
    %v1191 = vmax.f32 %v1117, 0.0
    %v1192 = vmax.f32 %v1122, 0.0
    %v1193 = vmax.f32 %v1127, 0.0
    %v1194 = vmax.f32 %v1132, 0.0
    %v1195 = vmax.f32 %v1137, 0.0
    %v1196 = vmax.f32 %v1142, 0.0
    %v1197 = vmax.f32 %v1147, 0.0
    %v1198 = vmax.f32 %v1152, 0.0
    %v1199 = vmax.f32 %v1157, 0.0
    %v1200 = vmax.f32 %v1162, 0.0
    %v1201 = vmax.f32 %v1167, 0.0
    %s1202 = scalar_lea.vmem [#allocation2], 128
    %v1203 = vld [vmem:[%s1202] sm:$0xff]
    %v1204 = vld [vmem:[%s1202 + $0x8] sm:$0xff]
    %v1205 = vld [vmem:[%s1202 + $0x10] sm:$0xff]
    %v1206 = vld [vmem:[%s1202 + $0x18] sm:$0xff]
    %v1207 = vld [vmem:[%s1202 + $0x20] sm:$0xff]
    %v1208 = vld [vmem:[%s1202 + $0x28] sm:$0xff]
    %v1209 = vld [vmem:[%s1202 + $0x30] sm:$0xff]
    %v1210 = vld [vmem:[%s1202 + $0x38] sm:$0xff]
    %v1211 = vld [vmem:[%s1202 + $0x40] sm:$0xff]
    %v1212 = vld [vmem:[%s1202 + $0x48] sm:$0xff]
    %v1213 = vld [vmem:[%s1202 + $0x50] sm:$0xff]
    %v1214 = vld [vmem:[%s1202 + $0x58] sm:$0xff]
    %v1215 = vld [vmem:[%s1202 + $0x60] sm:$0xff]
    %v1216 = vld [vmem:[%s1202 + $0x68] sm:$0xff]
    %v1217 = vld [vmem:[%s1202 + $0x70] sm:$0xff]
    %v1218 = vld [vmem:[%s1202 + $0x78] sm:$0xff]
    %v1219 = vlaneseq
    %v1220 = vshrl.u32 %v1219, 7
    %v1221 = vsub.s32 0, %v1220
    %v1222 = vrot.slane %v923, %v1221
    %1223 = vmatprep.subr.mxu0 0.0
    %1224 = vmatpush1.msra.mxu0 %v1203
    %1225 = vmatprep.subr.mxu0 0.0
    %1226 = vmatpush1.msra.mxu0 %v1204
    %1227 = vmatprep.subr.mxu0 0.0
    %1228 = vmatpush1.msra.mxu0 %v1205
    %1229 = vmatprep.subr.mxu0 0.0
    %1230 = vmatpush1.msra.mxu0 %v1206
    %1231 = vmatprep.subr.mxu0 0.0
    %1232 = vmatpush1.msra.mxu0 %v1207
    %1233 = vmatprep.subr.mxu0 0.0
    %1234 = vmatpush1.msra.mxu0 %v1208
    %1235 = vmatprep.subr.mxu0 0.0
    %1236 = vmatpush1.msra.mxu0 %v1209
    %1237 = vmatprep.subr.mxu0 0.0
    %1238 = vmatpush1.msra.mxu0 %v1210
    %1239 = vmatprep.subr.mxu0 0.0
    %1240 = vmatpush1.msra.mxu0 %v1211
    %1241 = vmatprep.subr.mxu0 0.0
    %1242 = vmatpush1.msra.mxu0 %v1212
    %1243 = vmatprep.subr.mxu0 0.0
    %1244 = vmatpush1.msra.mxu0 %v1213
    %1245 = vmatprep.subr.mxu0 0.0
    %1246 = vmatpush1.msra.mxu0 %v1214
    %1247 = vmatprep.subr.mxu0 0.0
    %1248 = vmatpush1.msra.mxu0 %v1215
    %1249 = vmatprep.subr.mxu0 0.0
    %1250 = vmatpush1.msra.mxu0 %v1216
    %1251 = vmatprep.subr.mxu0 0.0
    %1252 = vmatpush1.msra.mxu0 %v1217
    %1253 = vmatprep.subr.mxu0 0.0
    %1254 = vmatpush1.msra.mxu0 %v1218
    %1255 = vmatprep.subr.mxu0 0.0
    %1256 = vmatpush1.msra.mxu0 0.0
    %1257 = vmatprep.subr.mxu0 0.0
    %1258 = vmatpush1.msra.mxu0 0.0
    %1259 = vmatprep.subr.mxu0 0.0
    %1260 = vmatpush1.msra.mxu0 0.0
    %1261 = vmatprep.subr.mxu0 0.0
    %1262 = vmatpush1.msra.mxu0 0.0
    %1263 = vmatprep.subr.mxu0 0.0
    %1264 = vmatpush1.msra.mxu0 0.0
    %1265 = vmatprep.subr.mxu0 0.0
    %1266 = vmatpush1.msra.mxu0 0.0
    %1267 = vmatprep.subr.mxu0 0.0
    %1268 = vmatpush1.msra.mxu0 0.0
    %1269 = vmatprep.subr.mxu0 0.0
    %1270 = vmatpush1.msra.mxu0 0.0
    %1271 = vmatprep.subr.mxu0 0.0
    %1272 = vmatpush1.msra.mxu0 0.0
    %1273 = vmatprep.subr.mxu0 0.0
    %1274 = vmatpush1.msra.mxu0 0.0
    %1275 = vmatprep.subr.mxu0 0.0
    %1276 = vmatpush1.msra.mxu0 0.0
    %1277 = vmatprep.subr.mxu0 0.0
    %1278 = vmatpush1.msra.mxu0 0.0
    %1279 = vmatprep.subr.mxu0 0.0
    %1280 = vmatpush1.msra.mxu0 0.0
    %1281 = vmatprep.subr.mxu0 0.0
    %1282 = vmatpush1.msra.mxu0 0.0
    %1283 = vmatprep.subr.mxu0 0.0
    %1284 = vmatpush1.msra.mxu0 0.0
    %1285 = vmatprep.subr.mxu0 0.0
    %1286 = vmatpush1.msra.mxu0 0.0
    %1287 = vmatprep.mubr.f32.mxu0 0.0
    %1288 = vmatmul.mubr.f32.gmra.mrb[0].mxu0 %v1170
    %v1289 = vpop.f32.mrb[0].mxu0
    %v1290 = vadd.f32 %v1222, %v1289
    %v1291 = vpop.f32.mrb[0].mxu0
    %1292 = vmatprep.mubr.f32.mxu0 0.0
    %1293 = vmatmul.mubr.f32.gmra.mrb[0].mxu0 %v1171
    %v1294 = vpop.f32.mrb[0].mxu0
    %v1295 = vadd.f32 %v1222, %v1294
    %v1296 = vpop.f32.mrb[0].mxu0
    %1297 = vmatprep.mubr.f32.mxu0 0.0
    %1298 = vmatmul.mubr.f32.gmra.mrb[0].mxu0 %v1172
    %v1299 = vpop.f32.mrb[0].mxu0
    %v1300 = vadd.f32 %v1222, %v1299
    %v1301 = vpop.f32.mrb[0].mxu0
    %1302 = vmatprep.mubr.f32.mxu0 0.0
    %1303 = vmatmul.mubr.f32.gmra.mrb[0].mxu0 %v1173
    %v1304 = vpop.f32.mrb[0].mxu0
    %v1305 = vadd.f32 %v1222, %v1304
    %v1306 = vpop.f32.mrb[0].mxu0
    %1307 = vmatprep.mubr.f32.mxu0 0.0
    %1308 = vmatmul.mubr.f32.gmra.mrb[0].mxu0 %v1174
    %v1309 = vpop.f32.mrb[0].mxu0
    %v1310 = vadd.f32 %v1222, %v1309
    %v1311 = vpop.f32.mrb[0].mxu0
    %1312 = vmatprep.mubr.f32.mxu0 0.0
    %1313 = vmatmul.mubr.f32.gmra.mrb[0].mxu0 %v1175
    %v1314 = vpop.f32.mrb[0].mxu0
    %v1315 = vadd.f32 %v1222, %v1314
    %v1316 = vpop.f32.mrb[0].mxu0
    %1317 = vmatprep.mubr.f32.mxu0 0.0
    %1318 = vmatmul.mubr.f32.gmra.mrb[0].mxu0 %v1176
    %v1319 = vpop.f32.mrb[0].mxu0
    %v1320 = vadd.f32 %v1222, %v1319
    %v1321 = vpop.f32.mrb[0].mxu0
    %1322 = vmatprep.mubr.f32.mxu0 0.0
    %1323 = vmatmul.mubr.f32.gmra.mrb[0].mxu0 %v1177
    %v1324 = vpop.f32.mrb[0].mxu0
    %v1325 = vadd.f32 %v1222, %v1324
    %v1326 = vpop.f32.mrb[0].mxu0
    %1327 = vmatprep.mubr.f32.mxu0 0.0
    %1328 = vmatmul.mubr.f32.gmra.mrb[0].mxu0 %v1178
    %v1329 = vpop.f32.mrb[0].mxu0
    %v1330 = vadd.f32 %v1222, %v1329
    %v1331 = vpop.f32.mrb[0].mxu0
    %1332 = vmatprep.mubr.f32.mxu0 0.0
    %1333 = vmatmul.mubr.f32.gmra.mrb[0].mxu0 %v1179
    %v1334 = vpop.f32.mrb[0].mxu0
    %v1335 = vadd.f32 %v1222, %v1334
    %v1336 = vpop.f32.mrb[0].mxu0
    %1337 = vmatprep.mubr.f32.mxu0 0.0
    %1338 = vmatmul.mubr.f32.gmra.mrb[0].mxu0 %v1180
    %v1339 = vpop.f32.mrb[0].mxu0
    %v1340 = vadd.f32 %v1222, %v1339
    %v1341 = vpop.f32.mrb[0].mxu0
    %1342 = vmatprep.mubr.f32.mxu0 0.0
    %1343 = vmatmul.mubr.f32.gmra.mrb[0].mxu0 %v1181
    %v1344 = vpop.f32.mrb[0].mxu0
    %v1345 = vadd.f32 %v1222, %v1344
    %v1346 = vpop.f32.mrb[0].mxu0
    %1347 = vmatprep.mubr.f32.mxu0 0.0
    %1348 = vmatmul.mubr.f32.gmra.mrb[0].mxu0 %v1182
    %v1349 = vpop.f32.mrb[0].mxu0
    %v1350 = vadd.f32 %v1222, %v1349
    %v1351 = vpop.f32.mrb[0].mxu0
    %1352 = vmatprep.mubr.f32.mxu0 0.0
    %1353 = vmatmul.mubr.f32.gmra.mrb[0].mxu0 %v1183
    %v1354 = vpop.f32.mrb[0].mxu0
    %v1355 = vadd.f32 %v1222, %v1354
    %v1356 = vpop.f32.mrb[0].mxu0
    %1357 = vmatprep.mubr.f32.mxu0 0.0
    %1358 = vmatmul.mubr.f32.gmra.mrb[0].mxu0 %v1184
    %v1359 = vpop.f32.mrb[0].mxu0
    %v1360 = vadd.f32 %v1222, %v1359
    %v1361 = vpop.f32.mrb[0].mxu0
    %1362 = vmatprep.mubr.f32.mxu0 0.0
    %1363 = vmatmul.mubr.f32.gmra.mrb[0].mxu0 %v1185
    %v1364 = vpop.f32.mrb[0].mxu0
    %v1365 = vadd.f32 %v1222, %v1364
    %v1366 = vpop.f32.mrb[0].mxu0
    %1367 = vmatprep.mubr.f32.mxu0 0.0
    %1368 = vmatmul.mubr.f32.gmra.mrb[0].mxu0 %v1186
    %v1369 = vpop.f32.mrb[0].mxu0
    %v1370 = vadd.f32 %v1222, %v1369
    %v1371 = vpop.f32.mrb[0].mxu0
    %1372 = vmatprep.mubr.f32.mxu0 0.0
    %1373 = vmatmul.mubr.f32.gmra.mrb[0].mxu0 %v1187
    %v1374 = vpop.f32.mrb[0].mxu0
    %v1375 = vadd.f32 %v1222, %v1374
    %v1376 = vpop.f32.mrb[0].mxu0
    %1377 = vmatprep.mubr.f32.mxu0 0.0
    %1378 = vmatmul.mubr.f32.gmra.mrb[0].mxu0 %v1188
    %v1379 = vpop.f32.mrb[0].mxu0
    %v1380 = vadd.f32 %v1222, %v1379
    %v1381 = vpop.f32.mrb[0].mxu0
    %1382 = vmatprep.mubr.f32.mxu0 0.0
    %1383 = vmatmul.mubr.f32.gmra.mrb[0].mxu0 %v1189
    %v1384 = vpop.f32.mrb[0].mxu0
    %v1385 = vadd.f32 %v1222, %v1384
    %v1386 = vpop.f32.mrb[0].mxu0
    %1387 = vmatprep.mubr.f32.mxu0 0.0
    %1388 = vmatmul.mubr.f32.gmra.mrb[0].mxu0 %v1190
    %v1389 = vpop.f32.mrb[0].mxu0
    %v1390 = vadd.f32 %v1222, %v1389
    %v1391 = vpop.f32.mrb[0].mxu0
    %1392 = vmatprep.mubr.f32.mxu0 0.0
    %1393 = vmatmul.mubr.f32.gmra.mrb[0].mxu0 %v1191
    %v1394 = vpop.f32.mrb[0].mxu0
    %v1395 = vadd.f32 %v1222, %v1394
    %v1396 = vpop.f32.mrb[0].mxu0
    %1397 = vmatprep.mubr.f32.mxu0 0.0
    %1398 = vmatmul.mubr.f32.gmra.mrb[0].mxu0 %v1192
    %v1399 = vpop.f32.mrb[0].mxu0
    %v1400 = vadd.f32 %v1222, %v1399
    %v1401 = vpop.f32.mrb[0].mxu0
    %1402 = vmatprep.mubr.f32.mxu0 0.0
    %1403 = vmatmul.mubr.f32.gmra.mrb[0].mxu0 %v1193
    %v1404 = vpop.f32.mrb[0].mxu0
    %v1405 = vadd.f32 %v1222, %v1404
    %v1406 = vpop.f32.mrb[0].mxu0
    %1407 = vmatprep.mubr.f32.mxu0 0.0
    %1408 = vmatmul.mubr.f32.gmra.mrb[0].mxu0 %v1194
    %v1409 = vpop.f32.mrb[0].mxu0
    %v1410 = vadd.f32 %v1222, %v1409
    %v1411 = vpop.f32.mrb[0].mxu0
    %1412 = vmatprep.mubr.f32.mxu0 0.0
    %1413 = vmatmul.mubr.f32.gmra.mrb[0].mxu0 %v1195
    %v1414 = vpop.f32.mrb[0].mxu0
    %v1415 = vadd.f32 %v1222, %v1414
    %v1416 = vpop.f32.mrb[0].mxu0
    %1417 = vmatprep.mubr.f32.mxu0 0.0
    %1418 = vmatmul.mubr.f32.gmra.mrb[0].mxu0 %v1196
    %v1419 = vpop.f32.mrb[0].mxu0
    %v1420 = vadd.f32 %v1222, %v1419
    %v1421 = vpop.f32.mrb[0].mxu0
    %1422 = vmatprep.mubr.f32.mxu0 0.0
    %1423 = vmatmul.mubr.f32.gmra.mrb[0].mxu0 %v1197
    %v1424 = vpop.f32.mrb[0].mxu0
    %v1425 = vadd.f32 %v1222, %v1424
    %v1426 = vpop.f32.mrb[0].mxu0
    %1427 = vmatprep.mubr.f32.mxu0 0.0
    %1428 = vmatmul.mubr.f32.gmra.mrb[0].mxu0 %v1198
    %v1429 = vpop.f32.mrb[0].mxu0
    %v1430 = vadd.f32 %v1222, %v1429
    %v1431 = vpop.f32.mrb[0].mxu0
    %1432 = vmatprep.mubr.f32.mxu0 0.0
    %1433 = vmatmul.mubr.f32.gmra.mrb[0].mxu0 %v1199
    %v1434 = vpop.f32.mrb[0].mxu0
    %v1435 = vadd.f32 %v1222, %v1434
    %v1436 = vpop.f32.mrb[0].mxu0
    %1437 = vmatprep.mubr.f32.mxu0 0.0
    %1438 = vmatmul.mubr.f32.gmra.mrb[0].mxu0 %v1200
    %v1439 = vpop.f32.mrb[0].mxu0
    %v1440 = vadd.f32 %v1222, %v1439
    %v1441 = vpop.f32.mrb[0].mxu0
    %1442 = vmatprep.mubr.f32.mxu0 0.0
    %1443 = vmatmul.mubr.f32.gmra.mrb[0].mxu0 %v1201
    %v1444 = vpop.f32.mrb[0].mxu0
    %v1445 = vadd.f32 %v1222, %v1444
    %v1446 = vpop.f32.mrb[0].mxu0
    %1447 = vdwg.mxu0
    %1448 = vst [vmem:[#allocation5] sm:$0xff] %v1290
    %1449 = vst [vmem:[#allocation5 + $0x8] sm:$0xff] %v1295
    %1450 = vst [vmem:[#allocation5 + $0x10] sm:$0xff] %v1300
    %1451 = vst [vmem:[#allocation5 + $0x18] sm:$0xff] %v1305
    %1452 = vst [vmem:[#allocation5 + $0x20] sm:$0xff] %v1310
    %1453 = vst [vmem:[#allocation5 + $0x28] sm:$0xff] %v1315
    %1454 = vst [vmem:[#allocation5 + $0x30] sm:$0xff] %v1320
    %1455 = vst [vmem:[#allocation5 + $0x38] sm:$0xff] %v1325
    %1456 = vst [vmem:[#allocation5 + $0x40] sm:$0xff] %v1330
    %1457 = vst [vmem:[#allocation5 + $0x48] sm:$0xff] %v1335
    %1458 = vst [vmem:[#allocation5 + $0x50] sm:$0xff] %v1340
    %1459 = vst [vmem:[#allocation5 + $0x58] sm:$0xff] %v1345
    %1460 = vst [vmem:[#allocation5 + $0x60] sm:$0xff] %v1350
    %1461 = vst [vmem:[#allocation5 + $0x68] sm:$0xff] %v1355
    %1462 = vst [vmem:[#allocation5 + $0x70] sm:$0xff] %v1360
    %1463 = vst [vmem:[#allocation5 + $0x78] sm:$0xff] %v1365
    %1464 = vst [vmem:[#allocation5 + $0x80] sm:$0xff] %v1370
    %1465 = vst [vmem:[#allocation5 + $0x88] sm:$0xff] %v1375
    %1466 = vst [vmem:[#allocation5 + $0x90] sm:$0xff] %v1380
    %1467 = vst [vmem:[#allocation5 + $0x98] sm:$0xff] %v1385
    %1468 = vst [vmem:[#allocation5 + $0xa0] sm:$0xff] %v1390
    %1469 = vst [vmem:[#allocation5 + $0xa8] sm:$0xff] %v1395
    %1470 = vst [vmem:[#allocation5 + $0xb0] sm:$0xff] %v1400
    %1471 = vst [vmem:[#allocation5 + $0xb8] sm:$0xff] %v1405
    %1472 = vst [vmem:[#allocation5 + $0xc0] sm:$0xff] %v1410
    %1473 = vst [vmem:[#allocation5 + $0xc8] sm:$0xff] %v1415
    %1474 = vst [vmem:[#allocation5 + $0xd0] sm:$0xff] %v1420
    %1475 = vst [vmem:[#allocation5 + $0xd8] sm:$0xff] %v1425
    %1476 = vst [vmem:[#allocation5 + $0xe0] sm:$0xff] %v1430
    %1477 = vst [vmem:[#allocation5 + $0xe8] sm:$0xff] %v1435
    %1478 = vst [vmem:[#allocation5 + $0xf0] sm:$0xff] %v1440
    %1479 = vst [vmem:[#allocation5 + $0xf8] sm:$0xff] %v1445
    // Predicated region
    $region26: #{tpu_custom_call.1} parent=1 // pred_check
      _
    $region27: #{tpu_custom_call.1} parent=1 // pred_check_branch
      %1481 = sbr.rel (0) target = $region29
    $region28: #{tpu_custom_call.1} parent=1 // pred_region
      %s1483 = ssub.s32 4096, 4096
      %1484 = vsyncadd [#allocation4], %s1483
      %s1485 = sshll.u32 [#allocation5], 4
      %s1486 = int_to_ptr.vmem [resolvable:$true] %s1485
      %1491 = dma.vmem_to_hbm [thread:$0]  %s1486, 4096, %s5, [#allocation4], 128, 128, 8
    $region29: #{tpu_custom_call.1} parent=1 // pred_fallthru
      _
    // Predicated region
    $region30: #{tpu_custom_call.1} parent=1 // pred_check
      _
    $region31: #{tpu_custom_call.1} parent=1 // pred_check_branch
      %1493 = sbr.rel (0) target = $region33
    $region32: #{tpu_custom_call.1} parent=1 // pred_region
      %1494 = dma.done [#allocation4], 4096
    $region33: #{tpu_custom_call.1} parent=1 // pred_fallthru
      _
    %1495 = vsyncpa [#allocation3], 1
    %1496 = vsyncpa [#allocation4], 1

</llo_original>
